<compile_context>
chip_gen: v5e
topology: v5e:2x2
jax: 0.10.0
libtpu: 0.0.40
codegen_flags: <defaults>
</compile_context>

<pallas_src>
import functools

import jax
import jax.numpy as jnp
from jax.experimental import pallas as pl
from jax.experimental.pallas import tpu as pltpu


def _conv1d_k1_kernel(x_ref, w_ref, b_ref, o_ref, *, x_compute_dtype):
    # x_ref: (bb, d_ff, tl)   w_ref: (d_model, d_ff)  (already in compute dtype)
    # b_ref: (d_model, 1) f32  o_ref: (bb, d_model, tl)
    w = w_ref[...]
    bias = b_ref[...]
    for b in range(x_ref.shape[0]):          # static (unrolled) loop over batch block
        xb = x_ref[b]
        if x_compute_dtype is not None:
            xb = xb.astype(x_compute_dtype)  # VPU cast, hidden under the MXU op
        acc = jnp.dot(w, xb, preferred_element_type=jnp.float32)  # (d_model, tl) f32
        o_ref[b] = (acc + bias).astype(o_ref.dtype)


def _vmem_bytes(bb, d_ff, d_model, tl, x_isz, w_isz, o_isz):
    # Conservative: treat everything (incl. the constant-index weight/bias)
    # as double-buffered.
    return 2 * (bb * d_ff * tl * x_isz          # x blocks
                + bb * d_model * tl * o_isz     # out blocks
                + d_model * d_ff * w_isz        # resident weight
                + d_model * 4)                  # bias


def conv1d_k1(x_ncl, weight, bias, *, tl=512, compute_dtype=jnp.bfloat16,
              out_dtype=None):
    """Conv1d(kernel_size=1) forward, NCL-native (no wrapper transposes/pads).

    x_ncl:  (B, d_ff, L)      PyTorch NCL layout
    weight: (d_model, d_ff)   Conv1d weight squeezed over the kernel dim
    bias:   (d_model,)
    returns (B, d_model, L)
    """
    B, d_ff, L = x_ncl.shape
    d_model = weight.shape[0]
    out_dtype = x_ncl.dtype if out_dtype is None else out_dtype

    # bf16 MXU path: cast only the small weight in the wrapper; x is cast
    # in-kernel so the activation tensor never takes an extra HBM pass.
    if compute_dtype is not None:
        weight = weight.astype(compute_dtype)
    b2d = bias.reshape(d_model, 1).astype(jnp.float32)

    # Lane tile: large (HBM roofline), multiple of 128, no over-padding of tiny L.
    tl = max(128, min(int(tl), 128 * pl.cdiv(L, 128)))
    # v7x has 2 TensorCores: with B == 1, keep >= 2 L-tiles so both get work.
    if B == 1 and L > 128:
        tl = max(128, min(tl, 128 * pl.cdiv(L, 2 * 128)))
    n_l = pl.cdiv(L, tl)

    x_isz = jnp.dtype(x_ncl.dtype).itemsize
    w_isz = jnp.dtype(weight.dtype).itemsize
    o_isz = jnp.dtype(out_dtype).itemsize

    # Tiny-B fast path: fold the batch into one block (amortize per-step
    # overhead) only if the grid still keeps >= 2 steps (v7x) and the folded
    # blocks stay well under the scoped-VMEM budget.
    bb = 1
    if B <= 8 and n_l >= 2 and _vmem_bytes(B, d_ff, d_model, tl,
                                           x_isz, w_isz, o_isz) <= 24 * 1024 * 1024:
        bb = B

    est = _vmem_bytes(bb, d_ff, d_model, tl, x_isz, w_isz, o_isz)
    vmem_limit = max(32 * 1024 * 1024, int(est) + 4 * 1024 * 1024)

    kernel = functools.partial(_conv1d_k1_kernel, x_compute_dtype=compute_dtype)

    # TODO(synk): if d_model*d_ff grows so the resident weight no longer fits
    # (v7x: 64 MiB physical / 32 MiB scoped), add a K grid axis ("arbitrary")
    # with an f32 VMEM accumulator and pipeline_mode=pl.Buffered(1) on the
    # constant-index weight/bias specs.
    return pl.pallas_call(
        kernel,
        out_shape=jax.ShapeDtypeStruct((B, d_model, L), out_dtype),
        grid_spec=pl.GridSpec(
            grid=(pl.cdiv(B, bb), n_l),
            in_specs=[
                pl.BlockSpec((bb, d_ff, tl), lambda b, j: (b, 0, j)),
                pl.BlockSpec((d_model, d_ff), lambda b, j: (0, 0)),
                pl.BlockSpec((d_model, 1), lambda b, j: (0, 0)),
            ],
            out_specs=pl.BlockSpec((bb, d_model, tl), lambda b, j: (b, 0, j)),
        ),
        compiler_params=pltpu.CompilerParams(
            dimension_semantics=("parallel", "parallel"),
            vmem_limit_bytes=vmem_limit,
        ),
    )(x_ncl, weight, b2d)


if __name__ == "__main__":
    # Module defaults: Conv1d(d_ff=512 -> d_model=256, kernel_size=1).
    B, d_ff, d_model = 2, 512, 256

    key = jax.random.PRNGKey(0)
    kw, kb, kx1, kx2, kx3 = jax.random.split(key, 5)

    # Deterministic params (mimic PyTorch Conv1d uniform(-1/sqrt(fan_in), +)).
    bound = 1.0 / (d_ff ** 0.5)
    weight = jax.random.uniform(kw, (d_model, d_ff), jnp.float32, -bound, bound)
    bias = jax.random.uniform(kb, (d_model,), jnp.float32, -bound, bound)

    def ref_fn(x):
        return jnp.einsum("oi,bil->bol", weight, x) + bias[None, :, None]

    # Case 1: default bf16-MXU path, L a multiple of 128, grid (B, 1).
    L1 = 256
    x1 = jax.random.normal(kx1, (B, d_ff, L1), jnp.float32)
    o1 = jax.block_until_ready(conv1d_k1(x1, weight, bias))
    assert o1.shape == (B, d_model, L1)
    assert jnp.allclose(o1, ref_fn(x1), atol=5e-2, rtol=5e-2)

    # Case 2: f32 compute, ragged L (exercises the masked partial tail block).
    L2 = 200
    x2 = jax.random.normal(kx2, (B, d_ff, L2), jnp.float32)
    o2 = jax.block_until_ready(conv1d_k1(x2, weight, bias, compute_dtype=None))
    assert o2.shape == (B, d_model, L2)
    assert jnp.allclose(o2, ref_fn(x2), atol=1e-4, rtol=1e-4)

    # Case 3: longer L (tl=512, n_l=2) -> folded-batch fast path, bf16 MXU.
    L3 = 1024
    x3 = jax.random.normal(kx3, (B, d_ff, L3), jnp.float32)
    o3 = jax.block_until_ready(conv1d_k1(x3, weight, bias))
    assert o3.shape == (B, d_model, L3)
    assert jnp.allclose(o3, ref_fn(x3), atol=5e-2, rtol=5e-2)

    print("KERNEL_OK")
</pallas_src>

<mosaic_0001>
module attributes {stable_mosaic.version = 11 : i64} {
  func.func @_conv1d_k1_kernel(%arg0: i32, %arg1: i32, %arg2: memref<1x512x256xf32, #tpu.memory_space<vmem>>, %arg3: memref<256x512xbf16, #tpu.memory_space<vmem>>, %arg4: memref<256x1xf32, #tpu.memory_space<vmem>>, %arg5: memref<1x256x256xf32, #tpu.memory_space<vmem>>) attributes {dimension_semantics = [#tpu.dimension_semantics<parallel>, #tpu.dimension_semantics<parallel>], iteration_bounds = array<i64: 2, 1>, scalar_prefetch = 0 : i64, scratch_operands = 0 : i64, tpu.core_type = #tpu.core_type<tc>, window_params = [{transform_indices = @transform_0, window_bounds = array<i64: 1, 512, 256>}, {pipeline_mode = #tpu.pipeline_mode<synchronous>, transform_indices = @transform_1, window_bounds = array<i64: 256, 512>}, {pipeline_mode = #tpu.pipeline_mode<synchronous>, transform_indices = @transform_2, window_bounds = array<i64: 256, 1>}, {transform_indices = @transform_3, window_bounds = array<i64: 1, 256, 256>}]} {
    %c0 = arith.constant 0 : index
    %c0_0 = arith.constant 0 : index
    %0 = vector.load %arg3[%c0, %c0_0] : memref<256x512xbf16, #tpu.memory_space<vmem>>, vector<256x512xbf16>
    %c0_1 = arith.constant 0 : index
    %c0_2 = arith.constant 0 : index
    %1 = vector.load %arg4[%c0_1, %c0_2] : memref<256x1xf32, #tpu.memory_space<vmem>>, vector<256x1xf32>
    %c0_3 = arith.constant 0 : index
    %c0_4 = arith.constant 0 : index
    %c0_5 = arith.constant 0 : index
    %2 = vector.load %arg2[%c0_3, %c0_4, %c0_5] : memref<1x512x256xf32, #tpu.memory_space<vmem>>, vector<1x512x256xf32>
    %3 = vector.shape_cast %2 : vector<1x512x256xf32> to vector<512x256xf32>
    %4 = arith.truncf %3 : vector<512x256xf32> to vector<512x256xbf16>
    %cst = arith.constant dense<0.000000e+00> : vector<256x256xf32>
    %5 = tpu.matmul %0, %4, %cst {dimension_numbers = #tpu.dot_dimension_numbers<[1], [0], [0], [1], [0, 0, 1, 1], [], []>} : vector<256x512xbf16>, vector<512x256xbf16>, vector<256x256xf32> -> vector<256x256xf32>
    %6 = vector.broadcast %1 : vector<256x1xf32> to vector<256x256xf32>
    %7 = arith.addf %5, %6 : vector<256x256xf32>
    %c0_6 = arith.constant 0 : index
    %c0_7 = arith.constant 0 : index
    %c0_8 = arith.constant 0 : index
    %8 = vector.load %arg5[%c0_6, %c0_7, %c0_8] : memref<1x256x256xf32, #tpu.memory_space<vmem>>, vector<1x256x256xf32>
    %9 = vector.shape_cast %8 : vector<1x256x256xf32> to vector<256x256xf32>
    %10 = vector.shape_cast %7 : vector<256x256xf32> to vector<1x256x256xf32>
    tpu.vector_store %arg5[%c0_6, %c0_7, %c0_8], %10 {strides = array<i32>} : memref<1x256x256xf32, #tpu.memory_space<vmem>>, vector<1x256x256xf32>,
    return
  }
  func.func @transform_0(%arg0: i32, %arg1: i32) -> (i32, i32, i32) {
    %c0_i32 = arith.constant 0 : i32
    %c0_i32_0 = arith.constant 0 : i32
    return %arg0, %c0_i32, %arg1 : i32, i32, i32
  }
  func.func @transform_1(%arg0: i32, %arg1: i32) -> (i32, i32) {
    %c0_i32 = arith.constant 0 : i32
    %c0_i32_0 = arith.constant 0 : i32
    %c0_i32_1 = arith.constant 0 : i32
    return %c0_i32, %c0_i32_0 : i32, i32
  }
  func.func @transform_2(%arg0: i32, %arg1: i32) -> (i32, i32) {
    %c0_i32 = arith.constant 0 : i32
    %c0_i32_0 = arith.constant 0 : i32
    %c0_i32_1 = arith.constant 0 : i32
    return %c0_i32, %c0_i32_0 : i32, i32
  }
  func.func @transform_3(%arg0: i32, %arg1: i32) -> (i32, i32, i32) {
    %c0_i32 = arith.constant 0 : i32
    %c0_i32_0 = arith.constant 0 : i32
    return %arg0, %c0_i32, %arg1 : i32, i32, i32
  }
}

</mosaic_0001>

<llo_original>
// kernel: tpu_custom_call.1
$region0: #{tpu_custom_call.1}
  #allocation0 [shape = 'u32[]', space=smem, size = 0x4, offset = 0x4, fixed_abs, tag = 'smem constant byte address 0x4 - core index']
  #allocation1 [shape = 'u32[72,128]{1,0:T(1,128)}', space=vmem, size = 0x9000, scoped, tag = 'internal scratch']
  %s0 = inlined_call_operand.hbm [shape: f32[2,512,256], index: 0, kind: input, shape index: {}]
  %s1 = inlined_call_operand.hbm [shape: bf16[256,512], index: 1, kind: input, shape index: {}]
  %s2 = inlined_call_operand.vmem [shape: f32[256,1], index: 2, kind: input, shape index: {}]
  %s3 = inlined_call_operand.hbm [shape: f32[2,256,256], index: 3, kind: output, shape index: {}]
  %s4 = sld [smem:[#allocation0]]
  $region53: #{tpu_custom_call.1} parent=0
    _
  %s6 = ssub.s32 1, %s4
  %s7 = scalar_select 0, %s6, %s4
  $region1: #{tpu_custom_call.1} parent=0
    #allocation2 [shape = 'u8[1048576]{0}', space=vmem, size = 0x100000, scoped, tag = 'input window, operand 0']
    #allocation3 [shape = 's32[2]{0}', space=sflag, size = 0x8, scoped, tag = 'scoped memory for tpu_custom_call.1']
    #allocation4 [shape = 's32[2]{0}', space=sflag, size = 0x8, scoped, tag = 'scoped memory for tpu_custom_call.1']
    #allocation5 [shape = 'u8[262144]{0}', space=vmem, size = 0x40000, scoped, tag = 'input window, operand 1, single buffered']
    #allocation6 [shape = 's32[1]{0}', space=sflag, size = 0x4, scoped, tag = 'scoped memory for tpu_custom_call.1']
    #allocation7 [shape = 'u8[524288]{0}', space=vmem, size = 0x80000, scoped, tag = 'output window, operand 0']
    %8 = vsyncpa [#allocation3], 0
    %s9 = scalar_lea.sflag [#allocation3], 1
    %10 = vsyncpa %s9, 0
    %11 = vsyncpa [#allocation6], 0
    %12 = vsyncpa [#allocation4], 0
    %s13 = scalar_lea.sflag [#allocation4], 1
    %14 = vsyncpa %s13, 0
    loop: start=0, step=1, limit=4
    $region2: #{tpu_custom_call.1} parent=1 // loop_pre_header
      _
    $region3: #{tpu_custom_call.1} parent=1 // loop_header
      %s16 = sphi 0, %s20
      %p17 = scmp.ge.s32.totalorder %s16, 4
      %s23 = sphi 0, %s35
      %s24 = sphi 0, %s31
      %s25 = sphi 0, %s23
      %s26 = sphi 0, %s24
      %s27 = sphi 0, %s25
      %s28 = sphi 0, %s26
      %s40 = sphi 0, %s42
      %s43 = sphi 0, %s40
      %s44 = sphi 0, %s43
      %s60 = sphi 0, %s44
      %s64 = sphi 0, %s64
      %s66 = sphi 0, %s64
      %s67 = sphi 0, %s66
      %s81 = sphi 0, %s67
      %s85 = sphi 0, %s85
      %s87 = sphi 0, %s85
      %s88 = sphi 0, %s87
      %s102 = sphi 0, %s88
      %s110 = sphi 0, %s112
      %s113 = sphi 0, %s110
      %s114 = sphi 0, %s113
      %s130 = sphi 0, %s114
    $region4: #{tpu_custom_call.1} parent=1 // loop_header_branch
      %19 = sbr.rel (%p17) target = $region8
    $region5: #{tpu_custom_call.1} parent=1 // loop_body
      %s21 = ssub.s32 %s16, 1
      %s22 = ssub.s32 %s16, 2
      %s29 = sadd.s32 1, %s24
      %p30 = scmp.ge.s32.totalorder %s29, 1
      %s31 = scalar_select %p30, 0, %s29
      %s32 = sadd.s32 1, %s23
      %s33 = scalar_select %p30, %s32, %s23
      %p34 = scmp.ge.s32.totalorder %s33, 2
      %s35 = scalar_select %p34, 0, %s33
      %s36 = ssub.s32 %s23, %s35
      %s37 = ssub.s32 %s24, %s31
      %s38 = sor.u32 %s36, %s37
      %p39 = scmp.eq.s32.totalorder %s38, 0
      %s41 = sadd.s32 %s40, 1
      %s42 = scalar_select %p39, %s40, %s41
      %p45 = pneg %p39
      %p46 = scmp.eq.s32.totalorder %s16, 1
      %p47 = por %p45, %p46
      %p48 = scmp.ne.s32.totalorder %s40, %s43
      %p49 = scmp.eq.s32.totalorder %s16, 0
      %p50 = por %p48, %p49
      %p51 = scmp.ne.s32.totalorder %s40, %s43
      %p52 = scmp.eq.s32.totalorder %s21, 1
      %p53 = por %p51, %p52
      %p54 = scmp.ne.s32.totalorder %s43, %s44
      %p55 = scmp.eq.s32.totalorder %s21, 0
      %p56 = por %p54, %p55
      %p57 = scmp.ne.s32.totalorder %s43, %s44
      %p58 = scmp.eq.s32.totalorder %s22, 1
      %p59 = por %p57, %p58
      %p61 = scmp.ne.s32.totalorder %s44, %s60
      %p62 = scmp.eq.s32.totalorder %s22, 0
      %p63 = por %p61, %p62
      %s65 = sadd.s32 %s64, 1
      %p68 = scmp.eq.s32.totalorder %s16, 1
      %p69 = scmp.ne.s32.totalorder %s64, %s66
      %p70 = scmp.eq.s32.totalorder %s16, 0
      %p71 = por %p69, %p70
      %p72 = scmp.ne.s32.totalorder %s64, %s66
      %p73 = scmp.eq.s32.totalorder %s21, 1
      %p74 = por %p72, %p73
      %p75 = scmp.ne.s32.totalorder %s66, %s67
      %p76 = scmp.eq.s32.totalorder %s21, 0
      %p77 = por %p75, %p76
      %p78 = scmp.ne.s32.totalorder %s66, %s67
      %p79 = scmp.eq.s32.totalorder %s22, 1
      %p80 = por %p78, %p79
      %p82 = scmp.ne.s32.totalorder %s67, %s81
      %p83 = scmp.eq.s32.totalorder %s22, 0
      %p84 = por %p82, %p83
      %s86 = sadd.s32 %s85, 1
      %p89 = scmp.eq.s32.totalorder %s16, 1
      %p90 = scmp.ne.s32.totalorder %s85, %s87
      %p91 = scmp.eq.s32.totalorder %s16, 0
      %p92 = por %p90, %p91
      %p93 = scmp.ne.s32.totalorder %s85, %s87
      %p94 = scmp.eq.s32.totalorder %s21, 1
      %p95 = por %p93, %p94
      %p96 = scmp.ne.s32.totalorder %s87, %s88
      %p97 = scmp.eq.s32.totalorder %s21, 0
      %p98 = por %p96, %p97
      %p99 = scmp.ne.s32.totalorder %s87, %s88
      %p100 = scmp.eq.s32.totalorder %s22, 1
      %p101 = por %p99, %p100
      %p103 = scmp.ne.s32.totalorder %s88, %s102
      %p104 = scmp.eq.s32.totalorder %s22, 0
      %p105 = por %p103, %p104
      %s106 = ssub.s32 %s23, %s35
      %s107 = ssub.s32 %s24, %s31
      %s108 = sor.u32 %s106, %s107
      %p109 = scmp.eq.s32.totalorder %s108, 0
      %s111 = sadd.s32 %s110, 1
      %s112 = scalar_select %p109, %s110, %s111
      %p115 = pneg %p109
      %p116 = scmp.eq.s32.totalorder %s16, 1
      %p117 = por %p115, %p116
      %p118 = scmp.ne.s32.totalorder %s110, %s113
      %p119 = scmp.eq.s32.totalorder %s16, 0
      %p120 = por %p118, %p119
      %p121 = scmp.ne.s32.totalorder %s110, %s113
      %p122 = scmp.eq.s32.totalorder %s21, 1
      %p123 = por %p121, %p122
      %p124 = scmp.ne.s32.totalorder %s113, %s114
      %p125 = scmp.eq.s32.totalorder %s21, 0
      %p126 = por %p124, %p125
      %p127 = scmp.ne.s32.totalorder %s113, %s114
      %p128 = scmp.eq.s32.totalorder %s22, 1
      %p129 = por %p127, %p128
      %p131 = scmp.ne.s32.totalorder %s114, %s130
      %p132 = scmp.eq.s32.totalorder %s22, 0
      %p133 = por %p131, %p132
      %p134 = scmp.le.s32.totalorder 1, %s16
      %p135 = scmp.lt.s32.totalorder %s16, 3
      %p136 = pnand %p134, %p135
      %p137 = pneg %p136
      // Predicated region
      $region9: #{tpu_custom_call.1} parent=5 // pred_check
        _
      $region10: #{tpu_custom_call.1} parent=5 // pred_check_branch
        %139 = sbr.rel (%p136) target = $region12
      $region11: #{tpu_custom_call.1} parent=5 // pred_region
        %s140 = ssub.s32 %s16, 1
        // Predicated region
        $region13: #{tpu_custom_call.1} parent=11 // pred_check
          %p141 = pneg %p77
        $region14: #{tpu_custom_call.1} parent=11 // pred_check_branch
          %143 = sbr.rel (%p141) target = $region16
        $region15: #{tpu_custom_call.1} parent=11 // pred_region
          %145 = vsyncadd [#allocation6], 0
          %s146 = sshll.u32 %s1, 4
          %s147 = int_to_ptr.hbm [resolvable:$true] %s146
          %s148 = sshll.u32 [#allocation5], 4
          %s149 = int_to_ptr.vmem [resolvable:$true] %s148
          %154 = dma.hbm_to_vmem [thread:$0]  %s147, 8192, %s149, [#allocation6], 256, 256, 16
        $region16: #{tpu_custom_call.1} parent=11 // pred_fallthru
          _
        // Predicated region
        $region17: #{tpu_custom_call.1} parent=11 // pred_check
          %p155 = pneg %p98
        $region18: #{tpu_custom_call.1} parent=11 // pred_check_branch
          %157 = sbr.rel (%p155) target = $region20
        $region19: #{tpu_custom_call.1} parent=11 // pred_region
          _
        $region20: #{tpu_custom_call.1} parent=11 // pred_fallthru
          _
      $region12: #{tpu_custom_call.1} parent=5 // pred_fallthru
        _
      %p158 = scmp.lt.s32.totalorder %s16, 2
      // Predicated region
      $region21: #{tpu_custom_call.1} parent=5 // pred_check
        %p159 = pneg %p158
      $region22: #{tpu_custom_call.1} parent=5 // pred_check_branch
        %161 = sbr.rel (%p159) target = $region24
      $region23: #{tpu_custom_call.1} parent=5 // pred_region
        // Predicated region
        $region25: #{tpu_custom_call.1} parent=23 // pred_check
          %p162 = pneg %p50
        $region26: #{tpu_custom_call.1} parent=23 // pred_check_branch
          %164 = sbr.rel (%p162) target = $region28
        $region27: #{tpu_custom_call.1} parent=23 // pred_region
          %s165 = sand.u32 %s40, 1
          %s166 = scalar_lea.sflag [#allocation3], %s165
          %s167 = sand.u32 %s40, 1
          %s168 = smul.addr %s167, 1024
          %s169 = scalar_lea.vmem [#allocation2], %s168
          %s170 = smul.u32 2, %s24
          %172 = vsyncadd %s166, 0
          %s173 = smul.addr %s23, 128
          %s174 = sadd.s32 %s170, %s173
          %s175 = smul.addr %s174, 8
          %s176 = scalar_lea.hbm %s0, %s175
          %s177 = sshll.u32 %s176, 4
          %s178 = int_to_ptr.hbm [resolvable:$true] %s177
          %s179 = sshll.u32 %s169, 4
          %s180 = int_to_ptr.vmem [resolvable:$true] %s179
          %185 = dma.hbm_to_vmem [thread:$0]  %s178, 16384, %s180, %s166, 256, 256, 16
        $region28: #{tpu_custom_call.1} parent=23 // pred_fallthru
          _
      $region24: #{tpu_custom_call.1} parent=5 // pred_fallthru
        _
      %p186 = scmp.le.s32.totalorder 1, %s16
      %p187 = scmp.lt.s32.totalorder %s16, 3
      %p188 = pnand %p186, %p187
      %p189 = pneg %p188
      // Predicated region
      $region29: #{tpu_custom_call.1} parent=5 // pred_check
        _
      $region30: #{tpu_custom_call.1} parent=5 // pred_check_branch
        %191 = sbr.rel (%p188) target = $region32
      $region31: #{tpu_custom_call.1} parent=5 // pred_region
        %s192 = ssub.s32 %s16, 1
        %s193 = sand.u32 %s43, 1
        %s194 = scalar_lea.sflag [#allocation3], %s193
        %s195 = sand.u32 %s43, 1
        %s196 = smul.addr %s195, 1024
        %s197 = scalar_lea.vmem [#allocation2], %s196
        // Predicated region
        $region33: #{tpu_custom_call.1} parent=31 // pred_check
          %p198 = pneg %p56
        $region34: #{tpu_custom_call.1} parent=31 // pred_check_branch
          %200 = sbr.rel (%p198) target = $region36
        $region35: #{tpu_custom_call.1} parent=31 // pred_region
          %202 = dma.done %s194, 16384
        $region36: #{tpu_custom_call.1} parent=31 // pred_fallthru
          _
        // Predicated region
        $region37: #{tpu_custom_call.1} parent=31 // pred_check
          %p203 = pneg %p77
        $region38: #{tpu_custom_call.1} parent=31 // pred_check_branch
          %205 = sbr.rel (%p203) target = $region40
        $region39: #{tpu_custom_call.1} parent=31 // pred_region
          %207 = dma.done [#allocation6], 8192
        $region40: #{tpu_custom_call.1} parent=31 // pred_fallthru
          _
        %s208 = sand.u32 %s43, 1
        %s209 = scalar_lea.sflag [#allocation3], %s208
        %s210 = sand.u32 %s43, 1
        %s211 = smul.addr %s210, 1024
        %s212 = scalar_lea.vmem [#allocation2], %s211
        %p213 = pneg %p56
        %p214 = pneg %p53
        %p215 = pneg %p77
        %p216 = pneg %p74
        %p217 = pneg %p98
        %p218 = pneg %p95
        %p219 = pneg %p126
        %p220 = pneg %p123
        %s221 = sand.u32 %s113, 1
        %s222 = scalar_lea.sflag [#allocation4], %s221
        %s223 = sand.u32 %s113, 1
        %s224 = smul.addr %s223, 512
        %s225 = scalar_lea.vmem [#allocation7], %s224
        %s226 = smul.u32 2, %s26
        %s227 = smul.u32 2, %s26
        %v228 = vld [vmem:[#allocation5] sm:$0xff]
        %v229 = vld [vmem:[#allocation5 + $0x8] sm:$0xff]
        %v230 = vld [vmem:[#allocation5 + $0x10] sm:$0xff]
        %v231 = vld [vmem:[#allocation5 + $0x18] sm:$0xff]
        %v232 = vld [vmem:[#allocation5 + $0x20] sm:$0xff]
        %v233 = vld [vmem:[#allocation5 + $0x28] sm:$0xff]
        %v234 = vld [vmem:[#allocation5 + $0x30] sm:$0xff]
        %v235 = vld [vmem:[#allocation5 + $0x38] sm:$0xff]
        %v236 = vld [vmem:[#allocation5 + $0x40] sm:$0xff]
        %v237 = vld [vmem:[#allocation5 + $0x48] sm:$0xff]
        %v238 = vld [vmem:[#allocation5 + $0x50] sm:$0xff]
        %v239 = vld [vmem:[#allocation5 + $0x58] sm:$0xff]
        %v240 = vld [vmem:[#allocation5 + $0x60] sm:$0xff]
        %v241 = vld [vmem:[#allocation5 + $0x68] sm:$0xff]
        %v242 = vld [vmem:[#allocation5 + $0x70] sm:$0xff]
        %v243 = vld [vmem:[#allocation5 + $0x78] sm:$0xff]
        %v244 = vld [vmem:[#allocation5 + $0x80] sm:$0xff]
        %v245 = vld [vmem:[#allocation5 + $0x88] sm:$0xff]
        %v246 = vld [vmem:[#allocation5 + $0x90] sm:$0xff]
        %v247 = vld [vmem:[#allocation5 + $0x98] sm:$0xff]
        %v248 = vld [vmem:[#allocation5 + $0xa0] sm:$0xff]
        %v249 = vld [vmem:[#allocation5 + $0xa8] sm:$0xff]
        %v250 = vld [vmem:[#allocation5 + $0xb0] sm:$0xff]
        %v251 = vld [vmem:[#allocation5 + $0xb8] sm:$0xff]
        %v252 = vld [vmem:[#allocation5 + $0xc0] sm:$0xff]
        %v253 = vld [vmem:[#allocation5 + $0xc8] sm:$0xff]
        %v254 = vld [vmem:[#allocation5 + $0xd0] sm:$0xff]
        %v255 = vld [vmem:[#allocation5 + $0xd8] sm:$0xff]
        %v256 = vld [vmem:[#allocation5 + $0xe0] sm:$0xff]
        %v257 = vld [vmem:[#allocation5 + $0xe8] sm:$0xff]
        %v258 = vld [vmem:[#allocation5 + $0xf0] sm:$0xff]
        %v259 = vld [vmem:[#allocation5 + $0xf8] sm:$0xff]
        %v260 = vld [vmem:[#allocation5 + $0x100] sm:$0xff]
        %v261 = vld [vmem:[#allocation5 + $0x108] sm:$0xff]
        %v262 = vld [vmem:[#allocation5 + $0x110] sm:$0xff]
        %v263 = vld [vmem:[#allocation5 + $0x118] sm:$0xff]
        %v264 = vld [vmem:[#allocation5 + $0x120] sm:$0xff]
        %v265 = vld [vmem:[#allocation5 + $0x128] sm:$0xff]
        %v266 = vld [vmem:[#allocation5 + $0x130] sm:$0xff]
        %v267 = vld [vmem:[#allocation5 + $0x138] sm:$0xff]
        %v268 = vld [vmem:[#allocation5 + $0x140] sm:$0xff]
        %v269 = vld [vmem:[#allocation5 + $0x148] sm:$0xff]
        %v270 = vld [vmem:[#allocation5 + $0x150] sm:$0xff]
        %v271 = vld [vmem:[#allocation5 + $0x158] sm:$0xff]
        %v272 = vld [vmem:[#allocation5 + $0x160] sm:$0xff]
        %v273 = vld [vmem:[#allocation5 + $0x168] sm:$0xff]
        %v274 = vld [vmem:[#allocation5 + $0x170] sm:$0xff]
        %v275 = vld [vmem:[#allocation5 + $0x178] sm:$0xff]
        %v276 = vld [vmem:[#allocation5 + $0x180] sm:$0xff]
        %v277 = vld [vmem:[#allocation5 + $0x188] sm:$0xff]
        %v278 = vld [vmem:[#allocation5 + $0x190] sm:$0xff]
        %v279 = vld [vmem:[#allocation5 + $0x198] sm:$0xff]
        %v280 = vld [vmem:[#allocation5 + $0x1a0] sm:$0xff]
        %v281 = vld [vmem:[#allocation5 + $0x1a8] sm:$0xff]
        %v282 = vld [vmem:[#allocation5 + $0x1b0] sm:$0xff]
        %v283 = vld [vmem:[#allocation5 + $0x1b8] sm:$0xff]
        %v284 = vld [vmem:[#allocation5 + $0x1c0] sm:$0xff]
        %v285 = vld [vmem:[#allocation5 + $0x1c8] sm:$0xff]
        %v286 = vld [vmem:[#allocation5 + $0x1d0] sm:$0xff]
        %v287 = vld [vmem:[#allocation5 + $0x1d8] sm:$0xff]
        %v288 = vld [vmem:[#allocation5 + $0x1e0] sm:$0xff]
        %v289 = vld [vmem:[#allocation5 + $0x1e8] sm:$0xff]
        %v290 = vld [vmem:[#allocation5 + $0x1f0] sm:$0xff]
        %v291 = vld [vmem:[#allocation5 + $0x1f8] sm:$0xff]
        %v292 = vld [vmem:[%s2] sm:$0xff]
        %v293 = vld [vmem:[%s2 + $0x8] sm:$0xff]
        %v294 = vld [vmem:[%s2 + $0x10] sm:$0xff]
        %v295 = vld [vmem:[%s2 + $0x18] sm:$0xff]
        %v296 = vld [vmem:[%s2 + $0x20] sm:$0xff]
        %v297 = vld [vmem:[%s2 + $0x28] sm:$0xff]
        %v298 = vld [vmem:[%s2 + $0x30] sm:$0xff]
        %v299 = vld [vmem:[%s2 + $0x38] sm:$0xff]
        %v300 = vld [vmem:[%s2 + $0x40] sm:$0xff]
        %v301 = vld [vmem:[%s2 + $0x48] sm:$0xff]
        %v302 = vld [vmem:[%s2 + $0x50] sm:$0xff]
        %v303 = vld [vmem:[%s2 + $0x58] sm:$0xff]
        %v304 = vld [vmem:[%s2 + $0x60] sm:$0xff]
        %v305 = vld [vmem:[%s2 + $0x68] sm:$0xff]
        %v306 = vld [vmem:[%s2 + $0x70] sm:$0xff]
        %v307 = vld [vmem:[%s2 + $0x78] sm:$0xff]
        %v308 = vld [vmem:[%s2 + $0x80] sm:$0xff]
        %v309 = vld [vmem:[%s2 + $0x88] sm:$0xff]
        %v310 = vld [vmem:[%s2 + $0x90] sm:$0xff]
        %v311 = vld [vmem:[%s2 + $0x98] sm:$0xff]
        %v312 = vld [vmem:[%s2 + $0xa0] sm:$0xff]
        %v313 = vld [vmem:[%s2 + $0xa8] sm:$0xff]
        %v314 = vld [vmem:[%s2 + $0xb0] sm:$0xff]
        %v315 = vld [vmem:[%s2 + $0xb8] sm:$0xff]
        %v316 = vld [vmem:[%s2 + $0xc0] sm:$0xff]
        %v317 = vld [vmem:[%s2 + $0xc8] sm:$0xff]
        %v318 = vld [vmem:[%s2 + $0xd0] sm:$0xff]
        %v319 = vld [vmem:[%s2 + $0xd8] sm:$0xff]
        %v320 = vld [vmem:[%s2 + $0xe0] sm:$0xff]
        %v321 = vld [vmem:[%s2 + $0xe8] sm:$0xff]
        %v322 = vld [vmem:[%s2 + $0xf0] sm:$0xff]
        %v323 = vld [vmem:[%s2 + $0xf8] sm:$0xff]
        %v324 = vld [vmem:[%s197] sm:$0xff]
        %v325 = vld [vmem:[%s197 + $0x8] sm:$0xff]
        %v326 = vld [vmem:[%s197 + $0x10] sm:$0xff]
        %v327 = vld [vmem:[%s197 + $0x18] sm:$0xff]
        %v328 = vld [vmem:[%s197 + $0x20] sm:$0xff]
        %v329 = vld [vmem:[%s197 + $0x28] sm:$0xff]
        %v330 = vld [vmem:[%s197 + $0x30] sm:$0xff]
        %v331 = vld [vmem:[%s197 + $0x38] sm:$0xff]
        %v332 = vld [vmem:[%s197 + $0x40] sm:$0xff]
        %v333 = vld [vmem:[%s197 + $0x48] sm:$0xff]
        %v334 = vld [vmem:[%s197 + $0x50] sm:$0xff]
        %v335 = vld [vmem:[%s197 + $0x58] sm:$0xff]
        %v336 = vld [vmem:[%s197 + $0x60] sm:$0xff]
        %v337 = vld [vmem:[%s197 + $0x68] sm:$0xff]
        %v338 = vld [vmem:[%s197 + $0x70] sm:$0xff]
        %v339 = vld [vmem:[%s197 + $0x78] sm:$0xff]
        %v340 = vld [vmem:[%s197 + $0x80] sm:$0xff]
        %v341 = vld [vmem:[%s197 + $0x88] sm:$0xff]
        %v342 = vld [vmem:[%s197 + $0x90] sm:$0xff]
        %v343 = vld [vmem:[%s197 + $0x98] sm:$0xff]
        %v344 = vld [vmem:[%s197 + $0xa0] sm:$0xff]
        %v345 = vld [vmem:[%s197 + $0xa8] sm:$0xff]
        %v346 = vld [vmem:[%s197 + $0xb0] sm:$0xff]
        %v347 = vld [vmem:[%s197 + $0xb8] sm:$0xff]
        %v348 = vld [vmem:[%s197 + $0xc0] sm:$0xff]
        %v349 = vld [vmem:[%s197 + $0xc8] sm:$0xff]
        %v350 = vld [vmem:[%s197 + $0xd0] sm:$0xff]
        %v351 = vld [vmem:[%s197 + $0xd8] sm:$0xff]
        %v352 = vld [vmem:[%s197 + $0xe0] sm:$0xff]
        %v353 = vld [vmem:[%s197 + $0xe8] sm:$0xff]
        %v354 = vld [vmem:[%s197 + $0xf0] sm:$0xff]
        %v355 = vld [vmem:[%s197 + $0xf8] sm:$0xff]
        %v356 = vld [vmem:[%s197 + $0x100] sm:$0xff]
        %v357 = vld [vmem:[%s197 + $0x108] sm:$0xff]
        %v358 = vld [vmem:[%s197 + $0x110] sm:$0xff]
        %v359 = vld [vmem:[%s197 + $0x118] sm:$0xff]
        %v360 = vld [vmem:[%s197 + $0x120] sm:$0xff]
        %v361 = vld [vmem:[%s197 + $0x128] sm:$0xff]
        %v362 = vld [vmem:[%s197 + $0x130] sm:$0xff]
        %v363 = vld [vmem:[%s197 + $0x138] sm:$0xff]
        %v364 = vld [vmem:[%s197 + $0x140] sm:$0xff]
        %v365 = vld [vmem:[%s197 + $0x148] sm:$0xff]
        %v366 = vld [vmem:[%s197 + $0x150] sm:$0xff]
        %v367 = vld [vmem:[%s197 + $0x158] sm:$0xff]
        %v368 = vld [vmem:[%s197 + $0x160] sm:$0xff]
        %v369 = vld [vmem:[%s197 + $0x168] sm:$0xff]
        %v370 = vld [vmem:[%s197 + $0x170] sm:$0xff]
        %v371 = vld [vmem:[%s197 + $0x178] sm:$0xff]
        %v372 = vld [vmem:[%s197 + $0x180] sm:$0xff]
        %v373 = vld [vmem:[%s197 + $0x188] sm:$0xff]
        %v374 = vld [vmem:[%s197 + $0x190] sm:$0xff]
        %v375 = vld [vmem:[%s197 + $0x198] sm:$0xff]
        %v376 = vld [vmem:[%s197 + $0x1a0] sm:$0xff]
        %v377 = vld [vmem:[%s197 + $0x1a8] sm:$0xff]
        %v378 = vld [vmem:[%s197 + $0x1b0] sm:$0xff]
        %v379 = vld [vmem:[%s197 + $0x1b8] sm:$0xff]
        %v380 = vld [vmem:[%s197 + $0x1c0] sm:$0xff]
        %v381 = vld [vmem:[%s197 + $0x1c8] sm:$0xff]
        %v382 = vld [vmem:[%s197 + $0x1d0] sm:$0xff]
        %v383 = vld [vmem:[%s197 + $0x1d8] sm:$0xff]
        %v384 = vld [vmem:[%s197 + $0x1e0] sm:$0xff]
        %v385 = vld [vmem:[%s197 + $0x1e8] sm:$0xff]
        %v386 = vld [vmem:[%s197 + $0x1f0] sm:$0xff]
        %v387 = vld [vmem:[%s197 + $0x1f8] sm:$0xff]
        %v388 = vld [vmem:[%s197 + $0x200] sm:$0xff]
        %v389 = vld [vmem:[%s197 + $0x208] sm:$0xff]
        %v390 = vld [vmem:[%s197 + $0x210] sm:$0xff]
        %v391 = vld [vmem:[%s197 + $0x218] sm:$0xff]
        %v392 = vld [vmem:[%s197 + $0x220] sm:$0xff]
        %v393 = vld [vmem:[%s197 + $0x228] sm:$0xff]
        %v394 = vld [vmem:[%s197 + $0x230] sm:$0xff]
        %v395 = vld [vmem:[%s197 + $0x238] sm:$0xff]
        %v396 = vld [vmem:[%s197 + $0x240] sm:$0xff]
        %v397 = vld [vmem:[%s197 + $0x248] sm:$0xff]
        %v398 = vld [vmem:[%s197 + $0x250] sm:$0xff]
        %v399 = vld [vmem:[%s197 + $0x258] sm:$0xff]
        %v400 = vld [vmem:[%s197 + $0x260] sm:$0xff]
        %v401 = vld [vmem:[%s197 + $0x268] sm:$0xff]
        %v402 = vld [vmem:[%s197 + $0x270] sm:$0xff]
        %v403 = vld [vmem:[%s197 + $0x278] sm:$0xff]
        %v404 = vld [vmem:[%s197 + $0x280] sm:$0xff]
        %v405 = vld [vmem:[%s197 + $0x288] sm:$0xff]
        %v406 = vld [vmem:[%s197 + $0x290] sm:$0xff]
        %v407 = vld [vmem:[%s197 + $0x298] sm:$0xff]
        %v408 = vld [vmem:[%s197 + $0x2a0] sm:$0xff]
        %v409 = vld [vmem:[%s197 + $0x2a8] sm:$0xff]
        %v410 = vld [vmem:[%s197 + $0x2b0] sm:$0xff]
        %v411 = vld [vmem:[%s197 + $0x2b8] sm:$0xff]
        %v412 = vld [vmem:[%s197 + $0x2c0] sm:$0xff]
        %v413 = vld [vmem:[%s197 + $0x2c8] sm:$0xff]
        %v414 = vld [vmem:[%s197 + $0x2d0] sm:$0xff]
        %v415 = vld [vmem:[%s197 + $0x2d8] sm:$0xff]
        %v416 = vld [vmem:[%s197 + $0x2e0] sm:$0xff]
        %v417 = vld [vmem:[%s197 + $0x2e8] sm:$0xff]
        %v418 = vld [vmem:[%s197 + $0x2f0] sm:$0xff]
        %v419 = vld [vmem:[%s197 + $0x2f8] sm:$0xff]
        %v420 = vld [vmem:[%s197 + $0x300] sm:$0xff]
        %v421 = vld [vmem:[%s197 + $0x308] sm:$0xff]
        %v422 = vld [vmem:[%s197 + $0x310] sm:$0xff]
        %v423 = vld [vmem:[%s197 + $0x318] sm:$0xff]
        %v424 = vld [vmem:[%s197 + $0x320] sm:$0xff]
        %v425 = vld [vmem:[%s197 + $0x328] sm:$0xff]
        %v426 = vld [vmem:[%s197 + $0x330] sm:$0xff]
        %v427 = vld [vmem:[%s197 + $0x338] sm:$0xff]
        %v428 = vld [vmem:[%s197 + $0x340] sm:$0xff]
        %v429 = vld [vmem:[%s197 + $0x348] sm:$0xff]
        %v430 = vld [vmem:[%s197 + $0x350] sm:$0xff]
        %v431 = vld [vmem:[%s197 + $0x358] sm:$0xff]
        %v432 = vld [vmem:[%s197 + $0x360] sm:$0xff]
        %v433 = vld [vmem:[%s197 + $0x368] sm:$0xff]
        %v434 = vld [vmem:[%s197 + $0x370] sm:$0xff]
        %v435 = vld [vmem:[%s197 + $0x378] sm:$0xff]
        %v436 = vld [vmem:[%s197 + $0x380] sm:$0xff]
        %v437 = vld [vmem:[%s197 + $0x388] sm:$0xff]
        %v438 = vld [vmem:[%s197 + $0x390] sm:$0xff]
        %v439 = vld [vmem:[%s197 + $0x398] sm:$0xff]
        %v440 = vld [vmem:[%s197 + $0x3a0] sm:$0xff]
        %v441 = vld [vmem:[%s197 + $0x3a8] sm:$0xff]
        %v442 = vld [vmem:[%s197 + $0x3b0] sm:$0xff]
        %v443 = vld [vmem:[%s197 + $0x3b8] sm:$0xff]
        %v444 = vld [vmem:[%s197 + $0x3c0] sm:$0xff]
        %v445 = vld [vmem:[%s197 + $0x3c8] sm:$0xff]
        %v446 = vld [vmem:[%s197 + $0x3d0] sm:$0xff]
        %v447 = vld [vmem:[%s197 + $0x3d8] sm:$0xff]
        %v448 = vld [vmem:[%s197 + $0x3e0] sm:$0xff]
        %v449 = vld [vmem:[%s197 + $0x3e8] sm:$0xff]
        %v450 = vld [vmem:[%s197 + $0x3f0] sm:$0xff]
        %v451 = vld [vmem:[%s197 + $0x3f8] sm:$0xff]
        %v452 = vpack.c.bf16 %v326, %v324
        %v453 = vpack.c.bf16 %v327, %v325
        %v454 = vpack.c.bf16 %v330, %v328
        %v455 = vpack.c.bf16 %v331, %v329
        %v456 = vpack.c.bf16 %v334, %v332
        %v457 = vpack.c.bf16 %v335, %v333
        %v458 = vpack.c.bf16 %v338, %v336
        %v459 = vpack.c.bf16 %v339, %v337
        %v460 = vpack.c.bf16 %v342, %v340
        %v461 = vpack.c.bf16 %v343, %v341
        %v462 = vpack.c.bf16 %v346, %v344
        %v463 = vpack.c.bf16 %v347, %v345
        %v464 = vpack.c.bf16 %v350, %v348
        %v465 = vpack.c.bf16 %v351, %v349
        %v466 = vpack.c.bf16 %v354, %v352
        %v467 = vpack.c.bf16 %v355, %v353
        %v468 = vpack.c.bf16 %v358, %v356
        %v469 = vpack.c.bf16 %v359, %v357
        %v470 = vpack.c.bf16 %v362, %v360
        %v471 = vpack.c.bf16 %v363, %v361
        %v472 = vpack.c.bf16 %v366, %v364
        %v473 = vpack.c.bf16 %v367, %v365
        %v474 = vpack.c.bf16 %v370, %v368
        %v475 = vpack.c.bf16 %v371, %v369
        %v476 = vpack.c.bf16 %v374, %v372
        %v477 = vpack.c.bf16 %v375, %v373
        %v478 = vpack.c.bf16 %v378, %v376
        %v479 = vpack.c.bf16 %v379, %v377
        %v480 = vpack.c.bf16 %v382, %v380
        %v481 = vpack.c.bf16 %v383, %v381
        %v482 = vpack.c.bf16 %v386, %v384
        %v483 = vpack.c.bf16 %v387, %v385
        %v484 = vpack.c.bf16 %v390, %v388
        %v485 = vpack.c.bf16 %v391, %v389
        %v486 = vpack.c.bf16 %v394, %v392
        %v487 = vpack.c.bf16 %v395, %v393
        %v488 = vpack.c.bf16 %v398, %v396
        %v489 = vpack.c.bf16 %v399, %v397
        %v490 = vpack.c.bf16 %v402, %v400
        %v491 = vpack.c.bf16 %v403, %v401
        %v492 = vpack.c.bf16 %v406, %v404
        %v493 = vpack.c.bf16 %v407, %v405
        %v494 = vpack.c.bf16 %v410, %v408
        %v495 = vpack.c.bf16 %v411, %v409
        %v496 = vpack.c.bf16 %v414, %v412
        %v497 = vpack.c.bf16 %v415, %v413
        %v498 = vpack.c.bf16 %v418, %v416
        %v499 = vpack.c.bf16 %v419, %v417
        %v500 = vpack.c.bf16 %v422, %v420
        %v501 = vpack.c.bf16 %v423, %v421
        %v502 = vpack.c.bf16 %v426, %v424
        %v503 = vpack.c.bf16 %v427, %v425
        %v504 = vpack.c.bf16 %v430, %v428
        %v505 = vpack.c.bf16 %v431, %v429
        %v506 = vpack.c.bf16 %v434, %v432
        %v507 = vpack.c.bf16 %v435, %v433
        %v508 = vpack.c.bf16 %v438, %v436
        %v509 = vpack.c.bf16 %v439, %v437
        %v510 = vpack.c.bf16 %v442, %v440
        %v511 = vpack.c.bf16 %v443, %v441
        %v512 = vpack.c.bf16 %v446, %v444
        %v513 = vpack.c.bf16 %v447, %v445
        %v514 = vpack.c.bf16 %v450, %v448
        %v515 = vpack.c.bf16 %v451, %v449
        %517 = vset.pattern.permute.xlu0 0
        %518 = vperm.xlu0 %517, %v292
        %v519 = vpop.permute.xlu0 %518
        %522 = vset.pattern.permute.xlu0 0
        %523 = vperm.xlu0 %522, %v293
        %v524 = vpop.permute.xlu0 %523
        %527 = vset.pattern.permute.xlu0 0
        %528 = vperm.xlu0 %527, %v294
        %v529 = vpop.permute.xlu0 %528
        %532 = vset.pattern.permute.xlu0 0
        %533 = vperm.xlu0 %532, %v295
        %v534 = vpop.permute.xlu0 %533
        %537 = vset.pattern.permute.xlu0 0
        %538 = vperm.xlu0 %537, %v296
        %v539 = vpop.permute.xlu0 %538
        %542 = vset.pattern.permute.xlu0 0
        %543 = vperm.xlu0 %542, %v297
        %v544 = vpop.permute.xlu0 %543
        %547 = vset.pattern.permute.xlu0 0
        %548 = vperm.xlu0 %547, %v298
        %v549 = vpop.permute.xlu0 %548
        %552 = vset.pattern.permute.xlu0 0
        %553 = vperm.xlu0 %552, %v299
        %v554 = vpop.permute.xlu0 %553
        %557 = vset.pattern.permute.xlu0 0
        %558 = vperm.xlu0 %557, %v300
        %v559 = vpop.permute.xlu0 %558
        %562 = vset.pattern.permute.xlu0 0
        %563 = vperm.xlu0 %562, %v301
        %v564 = vpop.permute.xlu0 %563
        %567 = vset.pattern.permute.xlu0 0
        %568 = vperm.xlu0 %567, %v302
        %v569 = vpop.permute.xlu0 %568
        %572 = vset.pattern.permute.xlu0 0
        %573 = vperm.xlu0 %572, %v303
        %v574 = vpop.permute.xlu0 %573
        %577 = vset.pattern.permute.xlu0 0
        %578 = vperm.xlu0 %577, %v304
        %v579 = vpop.permute.xlu0 %578
        %582 = vset.pattern.permute.xlu0 0
        %583 = vperm.xlu0 %582, %v305
        %v584 = vpop.permute.xlu0 %583
        %587 = vset.pattern.permute.xlu0 0
        %588 = vperm.xlu0 %587, %v306
        %v589 = vpop.permute.xlu0 %588
        %592 = vset.pattern.permute.xlu0 0
        %593 = vperm.xlu0 %592, %v307
        %v594 = vpop.permute.xlu0 %593
        %597 = vset.pattern.permute.xlu0 0
        %598 = vperm.xlu0 %597, %v308
        %v599 = vpop.permute.xlu0 %598
        %602 = vset.pattern.permute.xlu0 0
        %603 = vperm.xlu0 %602, %v309
        %v604 = vpop.permute.xlu0 %603
        %607 = vset.pattern.permute.xlu0 0
        %608 = vperm.xlu0 %607, %v310
        %v609 = vpop.permute.xlu0 %608
        %612 = vset.pattern.permute.xlu0 0
        %613 = vperm.xlu0 %612, %v311
        %v614 = vpop.permute.xlu0 %613
        %617 = vset.pattern.permute.xlu0 0
        %618 = vperm.xlu0 %617, %v312
        %v619 = vpop.permute.xlu0 %618
        %622 = vset.pattern.permute.xlu0 0
        %623 = vperm.xlu0 %622, %v313
        %v624 = vpop.permute.xlu0 %623
        %627 = vset.pattern.permute.xlu0 0
        %628 = vperm.xlu0 %627, %v314
        %v629 = vpop.permute.xlu0 %628
        %632 = vset.pattern.permute.xlu0 0
        %633 = vperm.xlu0 %632, %v315
        %v634 = vpop.permute.xlu0 %633
        %637 = vset.pattern.permute.xlu0 0
        %638 = vperm.xlu0 %637, %v316
        %v639 = vpop.permute.xlu0 %638
        %642 = vset.pattern.permute.xlu0 0
        %643 = vperm.xlu0 %642, %v317
        %v644 = vpop.permute.xlu0 %643
        %647 = vset.pattern.permute.xlu0 0
        %648 = vperm.xlu0 %647, %v318
        %v649 = vpop.permute.xlu0 %648
        %652 = vset.pattern.permute.xlu0 0
        %653 = vperm.xlu0 %652, %v319
        %v654 = vpop.permute.xlu0 %653
        %657 = vset.pattern.permute.xlu0 0
        %658 = vperm.xlu0 %657, %v320
        %v659 = vpop.permute.xlu0 %658
        %662 = vset.pattern.permute.xlu0 0
        %663 = vperm.xlu0 %662, %v321
        %v664 = vpop.permute.xlu0 %663
        %667 = vset.pattern.permute.xlu0 0
        %668 = vperm.xlu0 %667, %v322
        %v669 = vpop.permute.xlu0 %668
        %672 = vset.pattern.permute.xlu0 0
        %673 = vperm.xlu0 %672, %v323
        %v674 = vpop.permute.xlu0 %673
        %v740 = vunpack.c.l.b16 %v228
        %v741 = vunpack.c.h.b16 %v228
        %v742 = vunpack.c.l.b16 %v229
        %v743 = vunpack.c.h.b16 %v229
        %v744 = vunpack.c.l.b16 %v230
        %v745 = vunpack.c.h.b16 %v230
        %v746 = vunpack.c.l.b16 %v231
        %v747 = vunpack.c.h.b16 %v231
        %v748 = vunpack.c.l.b16 %v232
        %v749 = vunpack.c.h.b16 %v232
        %v750 = vunpack.c.l.b16 %v233
        %v751 = vunpack.c.h.b16 %v233
        %v752 = vunpack.c.l.b16 %v234
        %v753 = vunpack.c.h.b16 %v234
        %v754 = vunpack.c.l.b16 %v235
        %v755 = vunpack.c.h.b16 %v235
        %v756 = vunpack.c.l.b16 %v236
        %v757 = vunpack.c.h.b16 %v236
        %v758 = vunpack.c.l.b16 %v237
        %v759 = vunpack.c.h.b16 %v237
        %v760 = vunpack.c.l.b16 %v238
        %v761 = vunpack.c.h.b16 %v238
        %v762 = vunpack.c.l.b16 %v239
        %v763 = vunpack.c.h.b16 %v239
        %v764 = vunpack.c.l.b16 %v240
        %v765 = vunpack.c.h.b16 %v240
        %v766 = vunpack.c.l.b16 %v241
        %v767 = vunpack.c.h.b16 %v241
        %v768 = vunpack.c.l.b16 %v242
        %v769 = vunpack.c.h.b16 %v242
        %v770 = vunpack.c.l.b16 %v243
        %v771 = vunpack.c.h.b16 %v243
        %v772 = vunpack.c.l.b16 %v244
        %v773 = vunpack.c.h.b16 %v244
        %v774 = vunpack.c.l.b16 %v245
        %v775 = vunpack.c.h.b16 %v245
        %v776 = vunpack.c.l.b16 %v246
        %v777 = vunpack.c.h.b16 %v246
        %v778 = vunpack.c.l.b16 %v247
        %v779 = vunpack.c.h.b16 %v247
        %v780 = vunpack.c.l.b16 %v248
        %v781 = vunpack.c.h.b16 %v248
        %v782 = vunpack.c.l.b16 %v249
        %v783 = vunpack.c.h.b16 %v249
        %v784 = vunpack.c.l.b16 %v250
        %v785 = vunpack.c.h.b16 %v250
        %v786 = vunpack.c.l.b16 %v251
        %v787 = vunpack.c.h.b16 %v251
        %v788 = vunpack.c.l.b16 %v252
        %v789 = vunpack.c.h.b16 %v252
        %v790 = vunpack.c.l.b16 %v253
        %v791 = vunpack.c.h.b16 %v253
        %v792 = vunpack.c.l.b16 %v254
        %v793 = vunpack.c.h.b16 %v254
        %v794 = vunpack.c.l.b16 %v255
        %v795 = vunpack.c.h.b16 %v255
        %v796 = vunpack.c.l.b16 %v256
        %v797 = vunpack.c.h.b16 %v256
        %v798 = vunpack.c.l.b16 %v257
        %v799 = vunpack.c.h.b16 %v257
        %v800 = vunpack.c.l.b16 %v258
        %v801 = vunpack.c.h.b16 %v258
        %v802 = vunpack.c.l.b16 %v259
        %v803 = vunpack.c.h.b16 %v259
        %v804 = vunpack.c.l.b16 %v260
        %v805 = vunpack.c.h.b16 %v260
        %v806 = vunpack.c.l.b16 %v261
        %v807 = vunpack.c.h.b16 %v261
        %v808 = vunpack.c.l.b16 %v262
        %v809 = vunpack.c.h.b16 %v262
        %v810 = vunpack.c.l.b16 %v263
        %v811 = vunpack.c.h.b16 %v263
        %v812 = vunpack.c.l.b16 %v264
        %v813 = vunpack.c.h.b16 %v264
        %v814 = vunpack.c.l.b16 %v265
        %v815 = vunpack.c.h.b16 %v265
        %v816 = vunpack.c.l.b16 %v266
        %v817 = vunpack.c.h.b16 %v266
        %v818 = vunpack.c.l.b16 %v267
        %v819 = vunpack.c.h.b16 %v267
        %v820 = vunpack.c.l.b16 %v268
        %v821 = vunpack.c.h.b16 %v268
        %v822 = vunpack.c.l.b16 %v269
        %v823 = vunpack.c.h.b16 %v269
        %v824 = vunpack.c.l.b16 %v270
        %v825 = vunpack.c.h.b16 %v270
        %v826 = vunpack.c.l.b16 %v271
        %v827 = vunpack.c.h.b16 %v271
        %v828 = vunpack.c.l.b16 %v272
        %v829 = vunpack.c.h.b16 %v272
        %v830 = vunpack.c.l.b16 %v273
        %v831 = vunpack.c.h.b16 %v273
        %v832 = vunpack.c.l.b16 %v274
        %v833 = vunpack.c.h.b16 %v274
        %v834 = vunpack.c.l.b16 %v275
        %v835 = vunpack.c.h.b16 %v275
        %v836 = vunpack.c.l.b16 %v276
        %v837 = vunpack.c.h.b16 %v276
        %v838 = vunpack.c.l.b16 %v277
        %v839 = vunpack.c.h.b16 %v277
        %v840 = vunpack.c.l.b16 %v278
        %v841 = vunpack.c.h.b16 %v278
        %v842 = vunpack.c.l.b16 %v279
        %v843 = vunpack.c.h.b16 %v279
        %v844 = vunpack.c.l.b16 %v280
        %v845 = vunpack.c.h.b16 %v280
        %v846 = vunpack.c.l.b16 %v281
        %v847 = vunpack.c.h.b16 %v281
        %v848 = vunpack.c.l.b16 %v282
        %v849 = vunpack.c.h.b16 %v282
        %v850 = vunpack.c.l.b16 %v283
        %v851 = vunpack.c.h.b16 %v283
        %v852 = vunpack.c.l.b16 %v284
        %v853 = vunpack.c.h.b16 %v284
        %v854 = vunpack.c.l.b16 %v285
        %v855 = vunpack.c.h.b16 %v285
        %v856 = vunpack.c.l.b16 %v286
        %v857 = vunpack.c.h.b16 %v286
        %v858 = vunpack.c.l.b16 %v287
        %v859 = vunpack.c.h.b16 %v287
        %v860 = vunpack.c.l.b16 %v288
        %v861 = vunpack.c.h.b16 %v288
        %v862 = vunpack.c.l.b16 %v289
        %v863 = vunpack.c.h.b16 %v289
        %v864 = vunpack.c.l.b16 %v290
        %v865 = vunpack.c.h.b16 %v290
        %v866 = vunpack.c.l.b16 %v291
        %v867 = vunpack.c.h.b16 %v291
        %v868 = vpack.c.b16 %v744, %v740
        %v869 = vpack.c.b16 %v745, %v741
        %v870 = vpack.c.b16 %v746, %v742
        %v871 = vpack.c.b16 %v747, %v743
        %v872 = vpack.c.b16 %v752, %v748
        %v873 = vpack.c.b16 %v753, %v749
        %v874 = vpack.c.b16 %v754, %v750
        %v875 = vpack.c.b16 %v755, %v751
        %v876 = vpack.c.b16 %v760, %v756
        %v877 = vpack.c.b16 %v761, %v757
        %v878 = vpack.c.b16 %v762, %v758
        %v879 = vpack.c.b16 %v763, %v759
        %v880 = vpack.c.b16 %v768, %v764
        %v881 = vpack.c.b16 %v769, %v765
        %v882 = vpack.c.b16 %v770, %v766
        %v883 = vpack.c.b16 %v771, %v767
        %v884 = vpack.c.b16 %v776, %v772
        %v885 = vpack.c.b16 %v777, %v773
        %v886 = vpack.c.b16 %v778, %v774
        %v887 = vpack.c.b16 %v779, %v775
        %v888 = vpack.c.b16 %v784, %v780
        %v889 = vpack.c.b16 %v785, %v781
        %v890 = vpack.c.b16 %v786, %v782
        %v891 = vpack.c.b16 %v787, %v783
        %v892 = vpack.c.b16 %v792, %v788
        %v893 = vpack.c.b16 %v793, %v789
        %v894 = vpack.c.b16 %v794, %v790
        %v895 = vpack.c.b16 %v795, %v791
        %v896 = vpack.c.b16 %v800, %v796
        %v897 = vpack.c.b16 %v801, %v797
        %v898 = vpack.c.b16 %v802, %v798
        %v899 = vpack.c.b16 %v803, %v799
        %v900 = vpack.c.b16 %v808, %v804
        %v901 = vpack.c.b16 %v809, %v805
        %v902 = vpack.c.b16 %v810, %v806
        %v903 = vpack.c.b16 %v811, %v807
        %v904 = vpack.c.b16 %v816, %v812
        %v905 = vpack.c.b16 %v817, %v813
        %v906 = vpack.c.b16 %v818, %v814
        %v907 = vpack.c.b16 %v819, %v815
        %v908 = vpack.c.b16 %v824, %v820
        %v909 = vpack.c.b16 %v825, %v821
        %v910 = vpack.c.b16 %v826, %v822
        %v911 = vpack.c.b16 %v827, %v823
        %v912 = vpack.c.b16 %v832, %v828
        %v913 = vpack.c.b16 %v833, %v829
        %v914 = vpack.c.b16 %v834, %v830
        %v915 = vpack.c.b16 %v835, %v831
        %v916 = vpack.c.b16 %v840, %v836
        %v917 = vpack.c.b16 %v841, %v837
        %v918 = vpack.c.b16 %v842, %v838
        %v919 = vpack.c.b16 %v843, %v839
        %v920 = vpack.c.b16 %v848, %v844
        %v921 = vpack.c.b16 %v849, %v845
        %v922 = vpack.c.b16 %v850, %v846
        %v923 = vpack.c.b16 %v851, %v847
        %v924 = vpack.c.b16 %v856, %v852
        %v925 = vpack.c.b16 %v857, %v853
        %v926 = vpack.c.b16 %v858, %v854
        %v927 = vpack.c.b16 %v859, %v855
        %v928 = vpack.c.b16 %v864, %v860
        %v929 = vpack.c.b16 %v865, %v861
        %v930 = vpack.c.b16 %v866, %v862
        %v931 = vpack.c.b16 %v867, %v863
        %996 = vmatpush.bf16.msra.mxu0 %v466
        %997 = vmatpush.bf16.msra.mxu0 %v464
        %998 = vmatpush.bf16.msra.mxu0 %v462
        %999 = vmatpush.bf16.msra.mxu0 %v460
        %1000 = vmatpush.bf16.msra.mxu0 %v458
        %1001 = vmatpush.bf16.msra.mxu0 %v456
        %1002 = vmatpush.bf16.msra.mxu0 %v454
        %1003 = vmatpush.bf16.msra.mxu0 %v452
        %1004 = vmatmul.bf16.gmra.mxu0 %v868
        %v1005 = vpop.f32.mrf.mxu0
        %v1006 = vadd.f32 %v519, %v1005
        %v1007 = vpop.f32.mrf.mxu0
        %v1008 = vadd.f32 %v524, %v1007
        %1009 = vmatmul.bf16.gmra.mxu0 %v872
        %v1010 = vpop.f32.mrf.mxu0
        %v1011 = vadd.f32 %v529, %v1010
        %v1012 = vpop.f32.mrf.mxu0
        %v1013 = vadd.f32 %v534, %v1012
        %1014 = vmatmul.bf16.gmra.mxu0 %v876
        %v1015 = vpop.f32.mrf.mxu0
        %v1016 = vadd.f32 %v539, %v1015
        %v1017 = vpop.f32.mrf.mxu0
        %v1018 = vadd.f32 %v544, %v1017
        %1019 = vmatmul.bf16.gmra.mxu0 %v880
        %v1020 = vpop.f32.mrf.mxu0
        %v1021 = vadd.f32 %v549, %v1020
        %v1022 = vpop.f32.mrf.mxu0
        %v1023 = vadd.f32 %v554, %v1022
        %1024 = vmatmul.bf16.gmra.mxu0 %v884
        %v1025 = vpop.f32.mrf.mxu0
        %v1026 = vadd.f32 %v559, %v1025
        %v1027 = vpop.f32.mrf.mxu0
        %v1028 = vadd.f32 %v564, %v1027
        %1029 = vmatmul.bf16.gmra.mxu0 %v888
        %v1030 = vpop.f32.mrf.mxu0
        %v1031 = vadd.f32 %v569, %v1030
        %v1032 = vpop.f32.mrf.mxu0
        %v1033 = vadd.f32 %v574, %v1032
        %1034 = vmatmul.bf16.gmra.mxu0 %v892
        %v1035 = vpop.f32.mrf.mxu0
        %v1036 = vadd.f32 %v579, %v1035
        %v1037 = vpop.f32.mrf.mxu0
        %v1038 = vadd.f32 %v584, %v1037
        %1039 = vmatmul.bf16.gmra.mxu0 %v896
        %v1040 = vpop.f32.mrf.mxu0
        %v1041 = vadd.f32 %v589, %v1040
        %v1042 = vpop.f32.mrf.mxu0
        %v1043 = vadd.f32 %v594, %v1042
        %1044 = vmatmul.bf16.gmra.mxu0 %v900
        %v1045 = vpop.f32.mrf.mxu0
        %v1046 = vadd.f32 %v599, %v1045
        %v1047 = vpop.f32.mrf.mxu0
        %v1048 = vadd.f32 %v604, %v1047
        %1049 = vmatmul.bf16.gmra.mxu0 %v904
        %v1050 = vpop.f32.mrf.mxu0
        %v1051 = vadd.f32 %v609, %v1050
        %v1052 = vpop.f32.mrf.mxu0
        %v1053 = vadd.f32 %v614, %v1052
        %1054 = vmatmul.bf16.gmra.mxu0 %v908
        %v1055 = vpop.f32.mrf.mxu0
        %v1056 = vadd.f32 %v619, %v1055
        %v1057 = vpop.f32.mrf.mxu0
        %v1058 = vadd.f32 %v624, %v1057
        %1059 = vmatmul.bf16.gmra.mxu0 %v912
        %v1060 = vpop.f32.mrf.mxu0
        %v1061 = vadd.f32 %v629, %v1060
        %v1062 = vpop.f32.mrf.mxu0
        %v1063 = vadd.f32 %v634, %v1062
        %1064 = vmatmul.bf16.gmra.mxu0 %v916
        %v1065 = vpop.f32.mrf.mxu0
        %v1066 = vadd.f32 %v639, %v1065
        %v1067 = vpop.f32.mrf.mxu0
        %v1068 = vadd.f32 %v644, %v1067
        %1069 = vmatmul.bf16.gmra.mxu0 %v920
        %v1070 = vpop.f32.mrf.mxu0
        %v1071 = vadd.f32 %v649, %v1070
        %v1072 = vpop.f32.mrf.mxu0
        %v1073 = vadd.f32 %v654, %v1072
        %1074 = vmatmul.bf16.gmra.mxu0 %v924
        %v1075 = vpop.f32.mrf.mxu0
        %v1076 = vadd.f32 %v659, %v1075
        %v1077 = vpop.f32.mrf.mxu0
        %v1078 = vadd.f32 %v664, %v1077
        %1079 = vmatmul.bf16.gmra.mxu0 %v928
        %v1080 = vpop.f32.mrf.mxu0
        %v1081 = vadd.f32 %v669, %v1080
        %v1082 = vpop.f32.mrf.mxu0
        %v1083 = vadd.f32 %v674, %v1082
        %1084 = vdwg.mxu0
        %1085 = vmatpush.bf16.msra.mxu0 %v482
        %1086 = vmatpush.bf16.msra.mxu0 %v480
        %1087 = vmatpush.bf16.msra.mxu0 %v478
        %1088 = vmatpush.bf16.msra.mxu0 %v476
        %1089 = vmatpush.bf16.msra.mxu0 %v474
        %1090 = vmatpush.bf16.msra.mxu0 %v472
        %1091 = vmatpush.bf16.msra.mxu0 %v470
        %1092 = vmatpush.bf16.msra.mxu0 %v468
        %1093 = vmatmul.bf16.gmra.mxu0 %v869
        %v1094 = vpop.f32.mrf.mxu0
        %v1095 = vadd.f32 %v1006, %v1094
        %v1096 = vpop.f32.mrf.mxu0
        %v1097 = vadd.f32 %v1008, %v1096
        %1098 = vmatmul.bf16.gmra.mxu0 %v873
        %v1099 = vpop.f32.mrf.mxu0
        %v1100 = vadd.f32 %v1011, %v1099
        %v1101 = vpop.f32.mrf.mxu0
        %v1102 = vadd.f32 %v1013, %v1101
        %1103 = vmatmul.bf16.gmra.mxu0 %v877
        %v1104 = vpop.f32.mrf.mxu0
        %v1105 = vadd.f32 %v1016, %v1104
        %v1106 = vpop.f32.mrf.mxu0
        %v1107 = vadd.f32 %v1018, %v1106
        %1108 = vmatmul.bf16.gmra.mxu0 %v881
        %v1109 = vpop.f32.mrf.mxu0
        %v1110 = vadd.f32 %v1021, %v1109
        %v1111 = vpop.f32.mrf.mxu0
        %v1112 = vadd.f32 %v1023, %v1111
        %1113 = vmatmul.bf16.gmra.mxu0 %v885
        %v1114 = vpop.f32.mrf.mxu0
        %v1115 = vadd.f32 %v1026, %v1114
        %v1116 = vpop.f32.mrf.mxu0
        %v1117 = vadd.f32 %v1028, %v1116
        %1118 = vmatmul.bf16.gmra.mxu0 %v889
        %v1119 = vpop.f32.mrf.mxu0
        %v1120 = vadd.f32 %v1031, %v1119
        %v1121 = vpop.f32.mrf.mxu0
        %v1122 = vadd.f32 %v1033, %v1121
        %1123 = vmatmul.bf16.gmra.mxu0 %v893
        %v1124 = vpop.f32.mrf.mxu0
        %v1125 = vadd.f32 %v1036, %v1124
        %v1126 = vpop.f32.mrf.mxu0
        %v1127 = vadd.f32 %v1038, %v1126
        %1128 = vmatmul.bf16.gmra.mxu0 %v897
        %v1129 = vpop.f32.mrf.mxu0
        %v1130 = vadd.f32 %v1041, %v1129
        %v1131 = vpop.f32.mrf.mxu0
        %v1132 = vadd.f32 %v1043, %v1131
        %1133 = vmatmul.bf16.gmra.mxu0 %v901
        %v1134 = vpop.f32.mrf.mxu0
        %v1135 = vadd.f32 %v1046, %v1134
        %v1136 = vpop.f32.mrf.mxu0
        %v1137 = vadd.f32 %v1048, %v1136
        %1138 = vmatmul.bf16.gmra.mxu0 %v905
        %v1139 = vpop.f32.mrf.mxu0
        %v1140 = vadd.f32 %v1051, %v1139
        %v1141 = vpop.f32.mrf.mxu0
        %v1142 = vadd.f32 %v1053, %v1141
        %1143 = vmatmul.bf16.gmra.mxu0 %v909
        %v1144 = vpop.f32.mrf.mxu0
        %v1145 = vadd.f32 %v1056, %v1144
        %v1146 = vpop.f32.mrf.mxu0
        %v1147 = vadd.f32 %v1058, %v1146
        %1148 = vmatmul.bf16.gmra.mxu0 %v913
        %v1149 = vpop.f32.mrf.mxu0
        %v1150 = vadd.f32 %v1061, %v1149
        %v1151 = vpop.f32.mrf.mxu0
        %v1152 = vadd.f32 %v1063, %v1151
        %1153 = vmatmul.bf16.gmra.mxu0 %v917
        %v1154 = vpop.f32.mrf.mxu0
        %v1155 = vadd.f32 %v1066, %v1154
        %v1156 = vpop.f32.mrf.mxu0
        %v1157 = vadd.f32 %v1068, %v1156
        %1158 = vmatmul.bf16.gmra.mxu0 %v921
        %v1159 = vpop.f32.mrf.mxu0
        %v1160 = vadd.f32 %v1071, %v1159
        %v1161 = vpop.f32.mrf.mxu0
        %v1162 = vadd.f32 %v1073, %v1161
        %1163 = vmatmul.bf16.gmra.mxu0 %v925
        %v1164 = vpop.f32.mrf.mxu0
        %v1165 = vadd.f32 %v1076, %v1164
        %v1166 = vpop.f32.mrf.mxu0
        %v1167 = vadd.f32 %v1078, %v1166
        %1168 = vmatmul.bf16.gmra.mxu0 %v929
        %v1169 = vpop.f32.mrf.mxu0
        %v1170 = vadd.f32 %v1081, %v1169
        %v1171 = vpop.f32.mrf.mxu0
        %v1172 = vadd.f32 %v1083, %v1171
        %1173 = vdwg.mxu0
        %1174 = vmatpush.bf16.msra.mxu0 %v498
        %1175 = vmatpush.bf16.msra.mxu0 %v496
        %1176 = vmatpush.bf16.msra.mxu0 %v494
        %1177 = vmatpush.bf16.msra.mxu0 %v492
        %1178 = vmatpush.bf16.msra.mxu0 %v490
        %1179 = vmatpush.bf16.msra.mxu0 %v488
        %1180 = vmatpush.bf16.msra.mxu0 %v486
        %1181 = vmatpush.bf16.msra.mxu0 %v484
        %1182 = vmatmul.bf16.gmra.mxu0 %v870
        %v1183 = vpop.f32.mrf.mxu0
        %v1184 = vadd.f32 %v1095, %v1183
        %v1185 = vpop.f32.mrf.mxu0
        %v1186 = vadd.f32 %v1097, %v1185
        %1187 = vmatmul.bf16.gmra.mxu0 %v874
        %v1188 = vpop.f32.mrf.mxu0
        %v1189 = vadd.f32 %v1100, %v1188
        %v1190 = vpop.f32.mrf.mxu0
        %v1191 = vadd.f32 %v1102, %v1190
        %1192 = vmatmul.bf16.gmra.mxu0 %v878
        %v1193 = vpop.f32.mrf.mxu0
        %v1194 = vadd.f32 %v1105, %v1193
        %v1195 = vpop.f32.mrf.mxu0
        %v1196 = vadd.f32 %v1107, %v1195
        %1197 = vmatmul.bf16.gmra.mxu0 %v882
        %v1198 = vpop.f32.mrf.mxu0
        %v1199 = vadd.f32 %v1110, %v1198
        %v1200 = vpop.f32.mrf.mxu0
        %v1201 = vadd.f32 %v1112, %v1200
        %1202 = vmatmul.bf16.gmra.mxu0 %v886
        %v1203 = vpop.f32.mrf.mxu0
        %v1204 = vadd.f32 %v1115, %v1203
        %v1205 = vpop.f32.mrf.mxu0
        %v1206 = vadd.f32 %v1117, %v1205
        %1207 = vmatmul.bf16.gmra.mxu0 %v890
        %v1208 = vpop.f32.mrf.mxu0
        %v1209 = vadd.f32 %v1120, %v1208
        %v1210 = vpop.f32.mrf.mxu0
        %v1211 = vadd.f32 %v1122, %v1210
        %1212 = vmatmul.bf16.gmra.mxu0 %v894
        %v1213 = vpop.f32.mrf.mxu0
        %v1214 = vadd.f32 %v1125, %v1213
        %v1215 = vpop.f32.mrf.mxu0
        %v1216 = vadd.f32 %v1127, %v1215
        %1217 = vmatmul.bf16.gmra.mxu0 %v898
        %v1218 = vpop.f32.mrf.mxu0
        %v1219 = vadd.f32 %v1130, %v1218
        %v1220 = vpop.f32.mrf.mxu0
        %v1221 = vadd.f32 %v1132, %v1220
        %1222 = vmatmul.bf16.gmra.mxu0 %v902
        %v1223 = vpop.f32.mrf.mxu0
        %v1224 = vadd.f32 %v1135, %v1223
        %v1225 = vpop.f32.mrf.mxu0
        %v1226 = vadd.f32 %v1137, %v1225
        %1227 = vmatmul.bf16.gmra.mxu0 %v906
        %v1228 = vpop.f32.mrf.mxu0
        %v1229 = vadd.f32 %v1140, %v1228
        %v1230 = vpop.f32.mrf.mxu0
        %v1231 = vadd.f32 %v1142, %v1230
        %1232 = vmatmul.bf16.gmra.mxu0 %v910
        %v1233 = vpop.f32.mrf.mxu0
        %v1234 = vadd.f32 %v1145, %v1233
        %v1235 = vpop.f32.mrf.mxu0
        %v1236 = vadd.f32 %v1147, %v1235
        %1237 = vmatmul.bf16.gmra.mxu0 %v914
        %v1238 = vpop.f32.mrf.mxu0
        %v1239 = vadd.f32 %v1150, %v1238
        %v1240 = vpop.f32.mrf.mxu0
        %v1241 = vadd.f32 %v1152, %v1240
        %1242 = vmatmul.bf16.gmra.mxu0 %v918
        %v1243 = vpop.f32.mrf.mxu0
        %v1244 = vadd.f32 %v1155, %v1243
        %v1245 = vpop.f32.mrf.mxu0
        %v1246 = vadd.f32 %v1157, %v1245
        %1247 = vmatmul.bf16.gmra.mxu0 %v922
        %v1248 = vpop.f32.mrf.mxu0
        %v1249 = vadd.f32 %v1160, %v1248
        %v1250 = vpop.f32.mrf.mxu0
        %v1251 = vadd.f32 %v1162, %v1250
        %1252 = vmatmul.bf16.gmra.mxu0 %v926
        %v1253 = vpop.f32.mrf.mxu0
        %v1254 = vadd.f32 %v1165, %v1253
        %v1255 = vpop.f32.mrf.mxu0
        %v1256 = vadd.f32 %v1167, %v1255
        %1257 = vmatmul.bf16.gmra.mxu0 %v930
        %v1258 = vpop.f32.mrf.mxu0
        %v1259 = vadd.f32 %v1170, %v1258
        %v1260 = vpop.f32.mrf.mxu0
        %v1261 = vadd.f32 %v1172, %v1260
        %1262 = vdwg.mxu0
        %1263 = vmatpush.bf16.msra.mxu0 %v514
        %1264 = vmatpush.bf16.msra.mxu0 %v512
        %1265 = vmatpush.bf16.msra.mxu0 %v510
        %1266 = vmatpush.bf16.msra.mxu0 %v508
        %1267 = vmatpush.bf16.msra.mxu0 %v506
        %1268 = vmatpush.bf16.msra.mxu0 %v504
        %1269 = vmatpush.bf16.msra.mxu0 %v502
        %1270 = vmatpush.bf16.msra.mxu0 %v500
        %1271 = vmatmul.bf16.gmra.mxu0 %v871
        %v1272 = vpop.f32.mrf.mxu0
        %v1273 = vadd.f32 %v1184, %v1272
        %v1274 = vpop.f32.mrf.mxu0
        %v1275 = vadd.f32 %v1186, %v1274
        %1276 = vmatmul.bf16.gmra.mxu0 %v875
        %v1277 = vpop.f32.mrf.mxu0
        %v1278 = vadd.f32 %v1189, %v1277
        %v1279 = vpop.f32.mrf.mxu0
        %v1280 = vadd.f32 %v1191, %v1279
        %1281 = vmatmul.bf16.gmra.mxu0 %v879
        %v1282 = vpop.f32.mrf.mxu0
        %v1283 = vadd.f32 %v1194, %v1282
        %v1284 = vpop.f32.mrf.mxu0
        %v1285 = vadd.f32 %v1196, %v1284
        %1286 = vmatmul.bf16.gmra.mxu0 %v883
        %v1287 = vpop.f32.mrf.mxu0
        %v1288 = vadd.f32 %v1199, %v1287
        %v1289 = vpop.f32.mrf.mxu0
        %v1290 = vadd.f32 %v1201, %v1289
        %1291 = vmatmul.bf16.gmra.mxu0 %v887
        %v1292 = vpop.f32.mrf.mxu0
        %v1293 = vadd.f32 %v1204, %v1292
        %v1294 = vpop.f32.mrf.mxu0
        %v1295 = vadd.f32 %v1206, %v1294
        %1296 = vmatmul.bf16.gmra.mxu0 %v891
        %v1297 = vpop.f32.mrf.mxu0
        %v1298 = vadd.f32 %v1209, %v1297
        %v1299 = vpop.f32.mrf.mxu0
        %v1300 = vadd.f32 %v1211, %v1299
        %1301 = vmatmul.bf16.gmra.mxu0 %v895
        %v1302 = vpop.f32.mrf.mxu0
        %v1303 = vadd.f32 %v1214, %v1302
        %v1304 = vpop.f32.mrf.mxu0
        %v1305 = vadd.f32 %v1216, %v1304
        %1306 = vmatmul.bf16.gmra.mxu0 %v899
        %v1307 = vpop.f32.mrf.mxu0
        %v1308 = vadd.f32 %v1219, %v1307
        %v1309 = vpop.f32.mrf.mxu0
        %v1310 = vadd.f32 %v1221, %v1309
        %1311 = vmatmul.bf16.gmra.mxu0 %v903
        %v1312 = vpop.f32.mrf.mxu0
        %v1313 = vadd.f32 %v1224, %v1312
        %v1314 = vpop.f32.mrf.mxu0
        %v1315 = vadd.f32 %v1226, %v1314
        %1316 = vmatmul.bf16.gmra.mxu0 %v907
        %v1317 = vpop.f32.mrf.mxu0
        %v1318 = vadd.f32 %v1229, %v1317
        %v1319 = vpop.f32.mrf.mxu0
        %v1320 = vadd.f32 %v1231, %v1319
        %1321 = vmatmul.bf16.gmra.mxu0 %v911
        %v1322 = vpop.f32.mrf.mxu0
        %v1323 = vadd.f32 %v1234, %v1322
        %v1324 = vpop.f32.mrf.mxu0
        %v1325 = vadd.f32 %v1236, %v1324
        %1326 = vmatmul.bf16.gmra.mxu0 %v915
        %v1327 = vpop.f32.mrf.mxu0
        %v1328 = vadd.f32 %v1239, %v1327
        %v1329 = vpop.f32.mrf.mxu0
        %v1330 = vadd.f32 %v1241, %v1329
        %1331 = vmatmul.bf16.gmra.mxu0 %v919
        %v1332 = vpop.f32.mrf.mxu0
        %v1333 = vadd.f32 %v1244, %v1332
        %v1334 = vpop.f32.mrf.mxu0
        %v1335 = vadd.f32 %v1246, %v1334
        %1336 = vmatmul.bf16.gmra.mxu0 %v923
        %v1337 = vpop.f32.mrf.mxu0
        %v1338 = vadd.f32 %v1249, %v1337
        %v1339 = vpop.f32.mrf.mxu0
        %v1340 = vadd.f32 %v1251, %v1339
        %1341 = vmatmul.bf16.gmra.mxu0 %v927
        %v1342 = vpop.f32.mrf.mxu0
        %v1343 = vadd.f32 %v1254, %v1342
        %v1344 = vpop.f32.mrf.mxu0
        %v1345 = vadd.f32 %v1256, %v1344
        %1346 = vmatmul.bf16.gmra.mxu0 %v931
        %v1347 = vpop.f32.mrf.mxu0
        %v1348 = vadd.f32 %v1259, %v1347
        %v1349 = vpop.f32.mrf.mxu0
        %v1350 = vadd.f32 %v1261, %v1349
        %1351 = vdwg.mxu0
        %1352 = vmatpush.bf16.msra.mxu0 %v467
        %1353 = vmatpush.bf16.msra.mxu0 %v465
        %1354 = vmatpush.bf16.msra.mxu0 %v463
        %1355 = vmatpush.bf16.msra.mxu0 %v461
        %1356 = vmatpush.bf16.msra.mxu0 %v459
        %1357 = vmatpush.bf16.msra.mxu0 %v457
        %1358 = vmatpush.bf16.msra.mxu0 %v455
        %1359 = vmatpush.bf16.msra.mxu0 %v453
        %1360 = vmatmul.bf16.gmra.mxu0 %v868
        %v1361 = vpop.f32.mrf.mxu0
        %v1362 = vadd.f32 %v519, %v1361
        %v1363 = vpop.f32.mrf.mxu0
        %v1364 = vadd.f32 %v524, %v1363
        %1365 = vmatmul.bf16.gmra.mxu0 %v872
        %v1366 = vpop.f32.mrf.mxu0
        %v1367 = vadd.f32 %v529, %v1366
        %v1368 = vpop.f32.mrf.mxu0
        %v1369 = vadd.f32 %v534, %v1368
        %1370 = vmatmul.bf16.gmra.mxu0 %v876
        %v1371 = vpop.f32.mrf.mxu0
        %v1372 = vadd.f32 %v539, %v1371
        %v1373 = vpop.f32.mrf.mxu0
        %v1374 = vadd.f32 %v544, %v1373
        %1375 = vmatmul.bf16.gmra.mxu0 %v880
        %v1376 = vpop.f32.mrf.mxu0
        %v1377 = vadd.f32 %v549, %v1376
        %v1378 = vpop.f32.mrf.mxu0
        %v1379 = vadd.f32 %v554, %v1378
        %1380 = vmatmul.bf16.gmra.mxu0 %v884
        %v1381 = vpop.f32.mrf.mxu0
        %v1382 = vadd.f32 %v559, %v1381
        %v1383 = vpop.f32.mrf.mxu0
        %v1384 = vadd.f32 %v564, %v1383
        %1385 = vmatmul.bf16.gmra.mxu0 %v888
        %v1386 = vpop.f32.mrf.mxu0
        %v1387 = vadd.f32 %v569, %v1386
        %v1388 = vpop.f32.mrf.mxu0
        %v1389 = vadd.f32 %v574, %v1388
        %1390 = vmatmul.bf16.gmra.mxu0 %v892
        %v1391 = vpop.f32.mrf.mxu0
        %v1392 = vadd.f32 %v579, %v1391
        %v1393 = vpop.f32.mrf.mxu0
        %v1394 = vadd.f32 %v584, %v1393
        %1395 = vmatmul.bf16.gmra.mxu0 %v896
        %v1396 = vpop.f32.mrf.mxu0
        %v1397 = vadd.f32 %v589, %v1396
        %v1398 = vpop.f32.mrf.mxu0
        %v1399 = vadd.f32 %v594, %v1398
        %1400 = vmatmul.bf16.gmra.mxu0 %v900
        %v1401 = vpop.f32.mrf.mxu0
        %v1402 = vadd.f32 %v599, %v1401
        %v1403 = vpop.f32.mrf.mxu0
        %v1404 = vadd.f32 %v604, %v1403
        %1405 = vmatmul.bf16.gmra.mxu0 %v904
        %v1406 = vpop.f32.mrf.mxu0
        %v1407 = vadd.f32 %v609, %v1406
        %v1408 = vpop.f32.mrf.mxu0
        %v1409 = vadd.f32 %v614, %v1408
        %1410 = vmatmul.bf16.gmra.mxu0 %v908
        %v1411 = vpop.f32.mrf.mxu0
        %v1412 = vadd.f32 %v619, %v1411
        %v1413 = vpop.f32.mrf.mxu0
        %v1414 = vadd.f32 %v624, %v1413
        %1415 = vmatmul.bf16.gmra.mxu0 %v912
        %v1416 = vpop.f32.mrf.mxu0
        %v1417 = vadd.f32 %v629, %v1416
        %v1418 = vpop.f32.mrf.mxu0
        %v1419 = vadd.f32 %v634, %v1418
        %1420 = vmatmul.bf16.gmra.mxu0 %v916
        %v1421 = vpop.f32.mrf.mxu0
        %v1422 = vadd.f32 %v639, %v1421
        %v1423 = vpop.f32.mrf.mxu0
        %v1424 = vadd.f32 %v644, %v1423
        %1425 = vmatmul.bf16.gmra.mxu0 %v920
        %v1426 = vpop.f32.mrf.mxu0
        %v1427 = vadd.f32 %v649, %v1426
        %v1428 = vpop.f32.mrf.mxu0
        %v1429 = vadd.f32 %v654, %v1428
        %1430 = vmatmul.bf16.gmra.mxu0 %v924
        %v1431 = vpop.f32.mrf.mxu0
        %v1432 = vadd.f32 %v659, %v1431
        %v1433 = vpop.f32.mrf.mxu0
        %v1434 = vadd.f32 %v664, %v1433
        %1435 = vmatmul.bf16.gmra.mxu0 %v928
        %v1436 = vpop.f32.mrf.mxu0
        %v1437 = vadd.f32 %v669, %v1436
        %v1438 = vpop.f32.mrf.mxu0
        %v1439 = vadd.f32 %v674, %v1438
        %1440 = vdwg.mxu0
        %1441 = vmatpush.bf16.msra.mxu0 %v483
        %1442 = vmatpush.bf16.msra.mxu0 %v481
        %1443 = vmatpush.bf16.msra.mxu0 %v479
        %1444 = vmatpush.bf16.msra.mxu0 %v477
        %1445 = vmatpush.bf16.msra.mxu0 %v475
        %1446 = vmatpush.bf16.msra.mxu0 %v473
        %1447 = vmatpush.bf16.msra.mxu0 %v471
        %1448 = vmatpush.bf16.msra.mxu0 %v469
        %1449 = vmatmul.bf16.gmra.mxu0 %v869
        %v1450 = vpop.f32.mrf.mxu0
        %v1451 = vadd.f32 %v1362, %v1450
        %v1452 = vpop.f32.mrf.mxu0
        %v1453 = vadd.f32 %v1364, %v1452
        %1454 = vmatmul.bf16.gmra.mxu0 %v873
        %v1455 = vpop.f32.mrf.mxu0
        %v1456 = vadd.f32 %v1367, %v1455
        %v1457 = vpop.f32.mrf.mxu0
        %v1458 = vadd.f32 %v1369, %v1457
        %1459 = vmatmul.bf16.gmra.mxu0 %v877
        %v1460 = vpop.f32.mrf.mxu0
        %v1461 = vadd.f32 %v1372, %v1460
        %v1462 = vpop.f32.mrf.mxu0
        %v1463 = vadd.f32 %v1374, %v1462
        %1464 = vmatmul.bf16.gmra.mxu0 %v881
        %v1465 = vpop.f32.mrf.mxu0
        %v1466 = vadd.f32 %v1377, %v1465
        %v1467 = vpop.f32.mrf.mxu0
        %v1468 = vadd.f32 %v1379, %v1467
        %1469 = vmatmul.bf16.gmra.mxu0 %v885
        %v1470 = vpop.f32.mrf.mxu0
        %v1471 = vadd.f32 %v1382, %v1470
        %v1472 = vpop.f32.mrf.mxu0
        %v1473 = vadd.f32 %v1384, %v1472
        %1474 = vmatmul.bf16.gmra.mxu0 %v889
        %v1475 = vpop.f32.mrf.mxu0
        %v1476 = vadd.f32 %v1387, %v1475
        %v1477 = vpop.f32.mrf.mxu0
        %v1478 = vadd.f32 %v1389, %v1477
        %1479 = vmatmul.bf16.gmra.mxu0 %v893
        %v1480 = vpop.f32.mrf.mxu0
        %v1481 = vadd.f32 %v1392, %v1480
        %v1482 = vpop.f32.mrf.mxu0
        %v1483 = vadd.f32 %v1394, %v1482
        %1484 = vmatmul.bf16.gmra.mxu0 %v897
        %v1485 = vpop.f32.mrf.mxu0
        %v1486 = vadd.f32 %v1397, %v1485
        %v1487 = vpop.f32.mrf.mxu0
        %v1488 = vadd.f32 %v1399, %v1487
        %1489 = vmatmul.bf16.gmra.mxu0 %v901
        %v1490 = vpop.f32.mrf.mxu0
        %v1491 = vadd.f32 %v1402, %v1490
        %v1492 = vpop.f32.mrf.mxu0
        %v1493 = vadd.f32 %v1404, %v1492
        %1494 = vmatmul.bf16.gmra.mxu0 %v905
        %v1495 = vpop.f32.mrf.mxu0
        %v1496 = vadd.f32 %v1407, %v1495
        %v1497 = vpop.f32.mrf.mxu0
        %v1498 = vadd.f32 %v1409, %v1497
        %1499 = vmatmul.bf16.gmra.mxu0 %v909
        %v1500 = vpop.f32.mrf.mxu0
        %v1501 = vadd.f32 %v1412, %v1500
        %v1502 = vpop.f32.mrf.mxu0
        %v1503 = vadd.f32 %v1414, %v1502
        %1504 = vmatmul.bf16.gmra.mxu0 %v913
        %v1505 = vpop.f32.mrf.mxu0
        %v1506 = vadd.f32 %v1417, %v1505
        %v1507 = vpop.f32.mrf.mxu0
        %v1508 = vadd.f32 %v1419, %v1507
        %1509 = vmatmul.bf16.gmra.mxu0 %v917
        %v1510 = vpop.f32.mrf.mxu0
        %v1511 = vadd.f32 %v1422, %v1510
        %v1512 = vpop.f32.mrf.mxu0
        %v1513 = vadd.f32 %v1424, %v1512
        %1514 = vmatmul.bf16.gmra.mxu0 %v921
        %v1515 = vpop.f32.mrf.mxu0
        %v1516 = vadd.f32 %v1427, %v1515
        %v1517 = vpop.f32.mrf.mxu0
        %v1518 = vadd.f32 %v1429, %v1517
        %1519 = vmatmul.bf16.gmra.mxu0 %v925
        %v1520 = vpop.f32.mrf.mxu0
        %v1521 = vadd.f32 %v1432, %v1520
        %v1522 = vpop.f32.mrf.mxu0
        %v1523 = vadd.f32 %v1434, %v1522
        %1524 = vmatmul.bf16.gmra.mxu0 %v929
        %v1525 = vpop.f32.mrf.mxu0
        %v1526 = vadd.f32 %v1437, %v1525
        %v1527 = vpop.f32.mrf.mxu0
        %v1528 = vadd.f32 %v1439, %v1527
        %1529 = vdwg.mxu0
        %1530 = vmatpush.bf16.msra.mxu0 %v499
        %1531 = vmatpush.bf16.msra.mxu0 %v497
        %1532 = vmatpush.bf16.msra.mxu0 %v495
        %1533 = vmatpush.bf16.msra.mxu0 %v493
        %1534 = vmatpush.bf16.msra.mxu0 %v491
        %1535 = vmatpush.bf16.msra.mxu0 %v489
        %1536 = vmatpush.bf16.msra.mxu0 %v487
        %1537 = vmatpush.bf16.msra.mxu0 %v485
        %1538 = vmatmul.bf16.gmra.mxu0 %v870
        %v1539 = vpop.f32.mrf.mxu0
        %v1540 = vadd.f32 %v1451, %v1539
        %v1541 = vpop.f32.mrf.mxu0
        %v1542 = vadd.f32 %v1453, %v1541
        %1543 = vmatmul.bf16.gmra.mxu0 %v874
        %v1544 = vpop.f32.mrf.mxu0
        %v1545 = vadd.f32 %v1456, %v1544
        %v1546 = vpop.f32.mrf.mxu0
        %v1547 = vadd.f32 %v1458, %v1546
        %1548 = vmatmul.bf16.gmra.mxu0 %v878
        %v1549 = vpop.f32.mrf.mxu0
        %v1550 = vadd.f32 %v1461, %v1549
        %v1551 = vpop.f32.mrf.mxu0
        %v1552 = vadd.f32 %v1463, %v1551
        %1553 = vmatmul.bf16.gmra.mxu0 %v882
        %v1554 = vpop.f32.mrf.mxu0
        %v1555 = vadd.f32 %v1466, %v1554
        %v1556 = vpop.f32.mrf.mxu0
        %v1557 = vadd.f32 %v1468, %v1556
        %1558 = vmatmul.bf16.gmra.mxu0 %v886
        %v1559 = vpop.f32.mrf.mxu0
        %v1560 = vadd.f32 %v1471, %v1559
        %v1561 = vpop.f32.mrf.mxu0
        %v1562 = vadd.f32 %v1473, %v1561
        %1563 = vmatmul.bf16.gmra.mxu0 %v890
        %v1564 = vpop.f32.mrf.mxu0
        %v1565 = vadd.f32 %v1476, %v1564
        %v1566 = vpop.f32.mrf.mxu0
        %v1567 = vadd.f32 %v1478, %v1566
        %1568 = vmatmul.bf16.gmra.mxu0 %v894
        %v1569 = vpop.f32.mrf.mxu0
        %v1570 = vadd.f32 %v1481, %v1569
        %v1571 = vpop.f32.mrf.mxu0
        %v1572 = vadd.f32 %v1483, %v1571
        %1573 = vmatmul.bf16.gmra.mxu0 %v898
        %v1574 = vpop.f32.mrf.mxu0
        %v1575 = vadd.f32 %v1486, %v1574
        %v1576 = vpop.f32.mrf.mxu0
        %v1577 = vadd.f32 %v1488, %v1576
        %1578 = vmatmul.bf16.gmra.mxu0 %v902
        %v1579 = vpop.f32.mrf.mxu0
        %v1580 = vadd.f32 %v1491, %v1579
        %v1581 = vpop.f32.mrf.mxu0
        %v1582 = vadd.f32 %v1493, %v1581
        %1583 = vmatmul.bf16.gmra.mxu0 %v906
        %v1584 = vpop.f32.mrf.mxu0
        %v1585 = vadd.f32 %v1496, %v1584
        %v1586 = vpop.f32.mrf.mxu0
        %v1587 = vadd.f32 %v1498, %v1586
        %1588 = vmatmul.bf16.gmra.mxu0 %v910
        %v1589 = vpop.f32.mrf.mxu0
        %v1590 = vadd.f32 %v1501, %v1589
        %v1591 = vpop.f32.mrf.mxu0
        %v1592 = vadd.f32 %v1503, %v1591
        %1593 = vmatmul.bf16.gmra.mxu0 %v914
        %v1594 = vpop.f32.mrf.mxu0
        %v1595 = vadd.f32 %v1506, %v1594
        %v1596 = vpop.f32.mrf.mxu0
        %v1597 = vadd.f32 %v1508, %v1596
        %1598 = vmatmul.bf16.gmra.mxu0 %v918
        %v1599 = vpop.f32.mrf.mxu0
        %v1600 = vadd.f32 %v1511, %v1599
        %v1601 = vpop.f32.mrf.mxu0
        %v1602 = vadd.f32 %v1513, %v1601
        %1603 = vmatmul.bf16.gmra.mxu0 %v922
        %v1604 = vpop.f32.mrf.mxu0
        %v1605 = vadd.f32 %v1516, %v1604
        %v1606 = vpop.f32.mrf.mxu0
        %v1607 = vadd.f32 %v1518, %v1606
        %1608 = vmatmul.bf16.gmra.mxu0 %v926
        %v1609 = vpop.f32.mrf.mxu0
        %v1610 = vadd.f32 %v1521, %v1609
        %v1611 = vpop.f32.mrf.mxu0
        %v1612 = vadd.f32 %v1523, %v1611
        %1613 = vmatmul.bf16.gmra.mxu0 %v930
        %v1614 = vpop.f32.mrf.mxu0
        %v1615 = vadd.f32 %v1526, %v1614
        %v1616 = vpop.f32.mrf.mxu0
        %v1617 = vadd.f32 %v1528, %v1616
        %1618 = vdwg.mxu0
        %1619 = vmatpush.bf16.msra.mxu0 %v515
        %1620 = vmatpush.bf16.msra.mxu0 %v513
        %1621 = vmatpush.bf16.msra.mxu0 %v511
        %1622 = vmatpush.bf16.msra.mxu0 %v509
        %1623 = vmatpush.bf16.msra.mxu0 %v507
        %1624 = vmatpush.bf16.msra.mxu0 %v505
        %1625 = vmatpush.bf16.msra.mxu0 %v503
        %1626 = vmatpush.bf16.msra.mxu0 %v501
        %1627 = vmatmul.bf16.gmra.mxu0 %v871
        %v1628 = vpop.f32.mrf.mxu0
        %v1629 = vadd.f32 %v1540, %v1628
        %v1630 = vpop.f32.mrf.mxu0
        %v1631 = vadd.f32 %v1542, %v1630
        %1632 = vmatmul.bf16.gmra.mxu0 %v875
        %v1633 = vpop.f32.mrf.mxu0
        %v1634 = vadd.f32 %v1545, %v1633
        %v1635 = vpop.f32.mrf.mxu0
        %v1636 = vadd.f32 %v1547, %v1635
        %1637 = vmatmul.bf16.gmra.mxu0 %v879
        %v1638 = vpop.f32.mrf.mxu0
        %v1639 = vadd.f32 %v1550, %v1638
        %v1640 = vpop.f32.mrf.mxu0
        %v1641 = vadd.f32 %v1552, %v1640
        %1642 = vmatmul.bf16.gmra.mxu0 %v883
        %v1643 = vpop.f32.mrf.mxu0
        %v1644 = vadd.f32 %v1555, %v1643
        %v1645 = vpop.f32.mrf.mxu0
        %v1646 = vadd.f32 %v1557, %v1645
        %1647 = vmatmul.bf16.gmra.mxu0 %v887
        %v1648 = vpop.f32.mrf.mxu0
        %v1649 = vadd.f32 %v1560, %v1648
        %v1650 = vpop.f32.mrf.mxu0
        %v1651 = vadd.f32 %v1562, %v1650
        %1652 = vmatmul.bf16.gmra.mxu0 %v891
        %v1653 = vpop.f32.mrf.mxu0
        %v1654 = vadd.f32 %v1565, %v1653
        %v1655 = vpop.f32.mrf.mxu0
        %v1656 = vadd.f32 %v1567, %v1655
        %1657 = vmatmul.bf16.gmra.mxu0 %v895
        %v1658 = vpop.f32.mrf.mxu0
        %v1659 = vadd.f32 %v1570, %v1658
        %v1660 = vpop.f32.mrf.mxu0
        %v1661 = vadd.f32 %v1572, %v1660
        %1662 = vmatmul.bf16.gmra.mxu0 %v899
        %v1663 = vpop.f32.mrf.mxu0
        %v1664 = vadd.f32 %v1575, %v1663
        %v1665 = vpop.f32.mrf.mxu0
        %v1666 = vadd.f32 %v1577, %v1665
        %1667 = vmatmul.bf16.gmra.mxu0 %v903
        %v1668 = vpop.f32.mrf.mxu0
        %v1669 = vadd.f32 %v1580, %v1668
        %v1670 = vpop.f32.mrf.mxu0
        %v1671 = vadd.f32 %v1582, %v1670
        %1672 = vmatmul.bf16.gmra.mxu0 %v907
        %v1673 = vpop.f32.mrf.mxu0
        %v1674 = vadd.f32 %v1585, %v1673
        %v1675 = vpop.f32.mrf.mxu0
        %v1676 = vadd.f32 %v1587, %v1675
        %1677 = vmatmul.bf16.gmra.mxu0 %v911
        %v1678 = vpop.f32.mrf.mxu0
        %v1679 = vadd.f32 %v1590, %v1678
        %v1680 = vpop.f32.mrf.mxu0
        %v1681 = vadd.f32 %v1592, %v1680
        %1682 = vmatmul.bf16.gmra.mxu0 %v915
        %v1683 = vpop.f32.mrf.mxu0
        %v1684 = vadd.f32 %v1595, %v1683
        %v1685 = vpop.f32.mrf.mxu0
        %v1686 = vadd.f32 %v1597, %v1685
        %1687 = vmatmul.bf16.gmra.mxu0 %v919
        %v1688 = vpop.f32.mrf.mxu0
        %v1689 = vadd.f32 %v1600, %v1688
        %v1690 = vpop.f32.mrf.mxu0
        %v1691 = vadd.f32 %v1602, %v1690
        %1692 = vmatmul.bf16.gmra.mxu0 %v923
        %v1693 = vpop.f32.mrf.mxu0
        %v1694 = vadd.f32 %v1605, %v1693
        %v1695 = vpop.f32.mrf.mxu0
        %v1696 = vadd.f32 %v1607, %v1695
        %1697 = vmatmul.bf16.gmra.mxu0 %v927
        %v1698 = vpop.f32.mrf.mxu0
        %v1699 = vadd.f32 %v1610, %v1698
        %v1700 = vpop.f32.mrf.mxu0
        %v1701 = vadd.f32 %v1612, %v1700
        %1702 = vmatmul.bf16.gmra.mxu0 %v931
        %v1703 = vpop.f32.mrf.mxu0
        %v1704 = vadd.f32 %v1615, %v1703
        %v1705 = vpop.f32.mrf.mxu0
        %v1706 = vadd.f32 %v1617, %v1705
        %1707 = vdwg.mxu0
        %1708 = vst [vmem:[%s225] sm:$0xff] %v1273
        %1709 = vst [vmem:[%s225 + $0x8] sm:$0xff] %v1629
        %1710 = vst [vmem:[%s225 + $0x10] sm:$0xff] %v1275
        %1711 = vst [vmem:[%s225 + $0x18] sm:$0xff] %v1631
        %1712 = vst [vmem:[%s225 + $0x20] sm:$0xff] %v1278
        %1713 = vst [vmem:[%s225 + $0x28] sm:$0xff] %v1634
        %1714 = vst [vmem:[%s225 + $0x30] sm:$0xff] %v1280
        %1715 = vst [vmem:[%s225 + $0x38] sm:$0xff] %v1636
        %1716 = vst [vmem:[%s225 + $0x40] sm:$0xff] %v1283
        %1717 = vst [vmem:[%s225 + $0x48] sm:$0xff] %v1639
        %1718 = vst [vmem:[%s225 + $0x50] sm:$0xff] %v1285
        %1719 = vst [vmem:[%s225 + $0x58] sm:$0xff] %v1641
        %1720 = vst [vmem:[%s225 + $0x60] sm:$0xff] %v1288
        %1721 = vst [vmem:[%s225 + $0x68] sm:$0xff] %v1644
        %1722 = vst [vmem:[%s225 + $0x70] sm:$0xff] %v1290
        %1723 = vst [vmem:[%s225 + $0x78] sm:$0xff] %v1646
        %1724 = vst [vmem:[%s225 + $0x80] sm:$0xff] %v1293
        %1725 = vst [vmem:[%s225 + $0x88] sm:$0xff] %v1649
        %1726 = vst [vmem:[%s225 + $0x90] sm:$0xff] %v1295
        %1727 = vst [vmem:[%s225 + $0x98] sm:$0xff] %v1651
        %1728 = vst [vmem:[%s225 + $0xa0] sm:$0xff] %v1298
        %1729 = vst [vmem:[%s225 + $0xa8] sm:$0xff] %v1654
        %1730 = vst [vmem:[%s225 + $0xb0] sm:$0xff] %v1300
        %1731 = vst [vmem:[%s225 + $0xb8] sm:$0xff] %v1656
        %1732 = vst [vmem:[%s225 + $0xc0] sm:$0xff] %v1303
        %1733 = vst [vmem:[%s225 + $0xc8] sm:$0xff] %v1659
        %1734 = vst [vmem:[%s225 + $0xd0] sm:$0xff] %v1305
        %1735 = vst [vmem:[%s225 + $0xd8] sm:$0xff] %v1661
        %1736 = vst [vmem:[%s225 + $0xe0] sm:$0xff] %v1308
        %1737 = vst [vmem:[%s225 + $0xe8] sm:$0xff] %v1664
        %1738 = vst [vmem:[%s225 + $0xf0] sm:$0xff] %v1310
        %1739 = vst [vmem:[%s225 + $0xf8] sm:$0xff] %v1666
        %1740 = vst [vmem:[%s225 + $0x100] sm:$0xff] %v1313
        %1741 = vst [vmem:[%s225 + $0x108] sm:$0xff] %v1669
        %1742 = vst [vmem:[%s225 + $0x110] sm:$0xff] %v1315
        %1743 = vst [vmem:[%s225 + $0x118] sm:$0xff] %v1671
        %1744 = vst [vmem:[%s225 + $0x120] sm:$0xff] %v1318
        %1745 = vst [vmem:[%s225 + $0x128] sm:$0xff] %v1674
        %1746 = vst [vmem:[%s225 + $0x130] sm:$0xff] %v1320
        %1747 = vst [vmem:[%s225 + $0x138] sm:$0xff] %v1676
        %1748 = vst [vmem:[%s225 + $0x140] sm:$0xff] %v1323
        %1749 = vst [vmem:[%s225 + $0x148] sm:$0xff] %v1679
        %1750 = vst [vmem:[%s225 + $0x150] sm:$0xff] %v1325
        %1751 = vst [vmem:[%s225 + $0x158] sm:$0xff] %v1681
        %1752 = vst [vmem:[%s225 + $0x160] sm:$0xff] %v1328
        %1753 = vst [vmem:[%s225 + $0x168] sm:$0xff] %v1684
        %1754 = vst [vmem:[%s225 + $0x170] sm:$0xff] %v1330
        %1755 = vst [vmem:[%s225 + $0x178] sm:$0xff] %v1686
        %1756 = vst [vmem:[%s225 + $0x180] sm:$0xff] %v1333
        %1757 = vst [vmem:[%s225 + $0x188] sm:$0xff] %v1689
        %1758 = vst [vmem:[%s225 + $0x190] sm:$0xff] %v1335
        %1759 = vst [vmem:[%s225 + $0x198] sm:$0xff] %v1691
        %1760 = vst [vmem:[%s225 + $0x1a0] sm:$0xff] %v1338
        %1761 = vst [vmem:[%s225 + $0x1a8] sm:$0xff] %v1694
        %1762 = vst [vmem:[%s225 + $0x1b0] sm:$0xff] %v1340
        %1763 = vst [vmem:[%s225 + $0x1b8] sm:$0xff] %v1696
        %1764 = vst [vmem:[%s225 + $0x1c0] sm:$0xff] %v1343
        %1765 = vst [vmem:[%s225 + $0x1c8] sm:$0xff] %v1699
        %1766 = vst [vmem:[%s225 + $0x1d0] sm:$0xff] %v1345
        %1767 = vst [vmem:[%s225 + $0x1d8] sm:$0xff] %v1701
        %1768 = vst [vmem:[%s225 + $0x1e0] sm:$0xff] %v1348
        %1769 = vst [vmem:[%s225 + $0x1e8] sm:$0xff] %v1704
        %1770 = vst [vmem:[%s225 + $0x1f0] sm:$0xff] %v1350
        %1771 = vst [vmem:[%s225 + $0x1f8] sm:$0xff] %v1706
        %s1772 = sand.u32 %s113, 1
        %s1773 = scalar_lea.sflag [#allocation4], %s1772
        %s1774 = sand.u32 %s113, 1
        %s1775 = smul.addr %s1774, 512
        %s1776 = scalar_lea.vmem [#allocation7], %s1775
        // Predicated region
        $region41: #{tpu_custom_call.1} parent=31 // pred_check
          %p1777 = pneg %p123
        $region42: #{tpu_custom_call.1} parent=31 // pred_check_branch
          %1779 = sbr.rel (%p1777) target = $region44
        $region43: #{tpu_custom_call.1} parent=31 // pred_region
          %s1780 = smul.u32 2, %s26
          %1782 = vsyncadd %s1773, 0
          %s1783 = smul.addr %s25, 64
          %s1784 = sadd.s32 %s1780, %s1783
          %s1785 = smul.addr %s1784, 8
          %s1786 = scalar_lea.hbm %s3, %s1785
          %s1787 = sshll.u32 %s1776, 4
          %s1788 = int_to_ptr.vmem [resolvable:$true] %s1787
          %s1789 = sshll.u32 %s1786, 4
          %s1790 = int_to_ptr.hbm [resolvable:$true] %s1789
          %1795 = dma.vmem_to_hbm [thread:$0]  %s1788, 8192, %s1790, %s1773, 256, 256, 16
        $region44: #{tpu_custom_call.1} parent=31 // pred_fallthru
          _
      $region32: #{tpu_custom_call.1} parent=5 // pred_fallthru
        _
      %p1796 = scmp.le.s32.totalorder 2, %s16
      // Predicated region
      $region45: #{tpu_custom_call.1} parent=5 // pred_check
        %p1797 = pneg %p1796
      $region46: #{tpu_custom_call.1} parent=5 // pred_check_branch
        %1799 = sbr.rel (%p1797) target = $region48
      $region47: #{tpu_custom_call.1} parent=5 // pred_region
        %s1800 = ssub.s32 %s16, 2
        // Predicated region
        $region49: #{tpu_custom_call.1} parent=47 // pred_check
          %p1801 = pneg %p129
        $region50: #{tpu_custom_call.1} parent=47 // pred_check_branch
          %1803 = sbr.rel (%p1801) target = $region52
        $region51: #{tpu_custom_call.1} parent=47 // pred_region
          %s1804 = sand.u32 %s114, 1
          %s1805 = scalar_lea.sflag [#allocation4], %s1804
          %s1806 = sand.u32 %s114, 1
          %s1807 = smul.addr %s1806, 512
          %s1808 = scalar_lea.vmem [#allocation7], %s1807
          %1810 = dma.done %s1805, 8192
        $region52: #{tpu_custom_call.1} parent=47 // pred_fallthru
          _
      $region48: #{tpu_custom_call.1} parent=5 // pred_fallthru
        _
    $region6: #{tpu_custom_call.1} parent=1 // loop_footer
      %s20 = sadd.s32 1, %s16
    $region7: #{tpu_custom_call.1} parent=1 // loop_footer_branch
      %15 = sbr.rel target = $region3
    $region8: #{tpu_custom_call.1} parent=1 // loop_exit
      _
    %1811 = vsyncpa [#allocation3], 1
    %s1812 = scalar_lea.sflag [#allocation3], 1
    %1813 = vsyncpa %s1812, 1
    %1814 = vsyncpa [#allocation6], 1
    %1815 = vsyncpa [#allocation4], 1
    %s1816 = scalar_lea.sflag [#allocation4], 1
    %1817 = vsyncpa %s1816, 1

</llo_original>
